<compile_context>
chip_gen: v7x
topology: tpu7x:2x2x1
jax: 0.10.0
libtpu: 0.0.40
codegen_flags: <defaults>
</compile_context>

<pallas_src>
import jax
import jax.numpy as jnp
from jax import lax
from jax.experimental import pallas as pl
from jax.experimental.pallas import tpu as pltpu

# Small shapes consistent with the module's forward
# (`seq_len, batch_size, feature_dim = traj_p.size()`).
S, B, F = 8, 4, 2      # seq_len, batch, feature_dim (traj_p)
XY = 2                 # traj_xy feature dim
H = 32                 # GRU hidden size (denoiser.seq_enc)
DOUT = 16              # output dim of denoiser.T and denoiser(...)
HM = 32                # MLP hidden size inside denoiser(...)
TIMESTEPS = 1000

BP = 8                 # batch padded to a full sublane tile
assert BP & (BP - 1) == 0, "padded-batch row mask requires BP to be a power of 2"
SBP = S * BP           # flattened (seq * padded batch) rows
FXY = F + XY
DW = 2 * FXY           # data-buffer lane width: [p(2) | xy(2) | noise(2) | ab(1) | 0(1)]

# Packed GRU-parameter buffer layout (rows, lane width 3H):
GRU_WI_ROW, GRU_WH_ROW, GRU_BI_ROW, GRU_BH_ROW, GRU_ROWS = 0, 8, 40, 41, 48
# Packed MLP/epilogue buffer layout (rows, lane width HM; lanes >= DOUT are zero
# in the diff weight/bias so they contribute 0 to the squared-error sum):
MLP_W1_ROW, MLP_B1_ROW, MLP_WD_ROW, MLP_BD_ROW, MLP_ROWS = 0, 4, 8, 8 + HM + H, 80


def ddpm_kernel(data_ref, gru_ref, mlp_ref, loss_ref):
    # ---- forward diffusion fused with feature concat -------------------------
    data = data_ref[...]                                  # (SBP, DW)
    ab = data[:, 6:7]                                     # (SBP, 1) alpha_bar_t
    sqrt_ab = jnp.sqrt(ab)
    sqrt_1mab = jnp.sqrt(1.0 - ab)
    lane = lax.broadcasted_iota(jnp.int32, (SBP, FXY), 1)
    is_p = lane < F
    scale_x = jnp.where(is_p, sqrt_ab, 1.0)               # xy columns pass through
    scale_n = jnp.where(is_p, sqrt_1mab, 0.0)
    # x_cat = [sqrt(ab)*traj_p + sqrt(1-ab)*noise | traj_xy]
    x_cat = scale_x * data[:, 0:FXY] + scale_n * data[:, FXY:2 * FXY]   # (SBP, FXY)

    # ---- seq_enc: single-layer GRU over the sequence --------------------------
    wi = gru_ref[GRU_WI_ROW:GRU_WI_ROW + DW, :]           # (DW, 3H); rows >= F are 0
    wh = gru_ref[GRU_WH_ROW:GRU_WH_ROW + H, :]            # (H, 3H)
    bi = gru_ref[GRU_BI_ROW:GRU_BI_ROW + 1, :]            # (1, 3H)
    bh = gru_ref[GRU_BH_ROW:GRU_BH_ROW + 1, :]            # (1, 3H)

    # Hoisted, fused input-to-hidden matmul for all timesteps and all 3 gates.
    # (GRU input is traj_p only; the non-p rows of wi are zero, so the full data
    # buffer can feed the matmul directly — no lane slicing.)
    gi = jnp.dot(data, wi, preferred_element_type=jnp.float32) + bi   # (SBP, 3H)

    h = jnp.zeros((BP, H), jnp.float32)
    hs = []
    for t in range(S):                                     # static unroll, S = 8
        r0 = t * BP
        gh = jnp.dot(h, wh, preferred_element_type=jnp.float32) + bh  # (BP, 3H)
        g = gi[r0:r0 + BP]
        r = jax.nn.sigmoid(g[:, 0:H] + gh[:, 0:H])
        z = jax.nn.sigmoid(g[:, H:2 * H] + gh[:, H:2 * H])
        n = jnp.tanh(g[:, 2 * H:3 * H] + r * gh[:, 2 * H:3 * H])      # bh_n inside r*(...)
        h = (1.0 - z) * n + z * h
        hs.append(h)                                       # stays in vregs
    enc = jnp.concatenate(hs, axis=0)                      # (SBP, H)

    # ---- denoiser(x_t, traj_xy): 2-layer MLP, fused first matmul ---------------
    w1 = mlp_ref[MLP_W1_ROW:MLP_W1_ROW + FXY, :]           # (FXY, HM)
    b1 = mlp_ref[MLP_B1_ROW:MLP_B1_ROW + 1, :]             # (1, HM)
    h1 = jnp.maximum(
        jnp.dot(x_cat, w1, preferred_element_type=jnp.float32) + b1, 0.0)  # (SBP, HM)

    # ---- fused pred - target: one K=64 matmul on [h1 | enc] --------------------
    w_diff = mlp_ref[MLP_WD_ROW:MLP_WD_ROW + HM + H, :]    # (HM+H, HM) = [w2; -wT], lanes>=DOUT zero
    b_diff = mlp_ref[MLP_BD_ROW:MLP_BD_ROW + 1, :]         # (1, HM)    = b2 - bT,  lanes>=DOUT zero
    hcat = jnp.concatenate([h1, enc], axis=-1)             # (SBP, HM+H)
    diff = jnp.dot(hcat, w_diff,
                   preferred_element_type=jnp.float32) + b_diff        # (SBP, HM)

    # ---- MSE over the real (unpadded) batch rows only --------------------------
    row = lax.broadcasted_iota(jnp.int32, (SBP, HM), 0)
    valid = jnp.bitwise_and(row, BP - 1) < B               # (row % BP) < B; BP is pow2
    masked = jnp.where(valid, diff, 0.0)                   # padding lanes already 0
    loss_ref[0, 0] = jnp.sum(masked * masked) * (1.0 / (S * B * DOUT))


def prepare_params(p):
    """One-time weight packing (hoisted out of the per-call path)."""
    gru = jnp.zeros((GRU_ROWS, 3 * H), jnp.float32)
    gru = gru.at[GRU_WI_ROW:GRU_WI_ROW + F, :].set(p["wi"])       # non-p rows stay 0
    gru = gru.at[GRU_WH_ROW:GRU_WH_ROW + H, :].set(p["wh"])
    gru = gru.at[GRU_BI_ROW, :].set(p["bi"][0])
    gru = gru.at[GRU_BH_ROW, :].set(p["bh"][0])

    w1 = jnp.concatenate([p["w1p"], p["w1xy"]], axis=0)           # (FXY, HM)
    w_diff = jnp.concatenate([p["w2"], -p["wT"]], axis=0)         # (HM+H, DOUT)
    b_diff = p["b2"] - p["bT"]                                    # (1, DOUT)

    mlp = jnp.zeros((MLP_ROWS, HM), jnp.float32)
    mlp = mlp.at[MLP_W1_ROW:MLP_W1_ROW + FXY, :].set(w1)
    mlp = mlp.at[MLP_B1_ROW, :].set(p["b1"][0])
    mlp = mlp.at[MLP_WD_ROW:MLP_WD_ROW + HM + H, 0:DOUT].set(w_diff)
    mlp = mlp.at[MLP_BD_ROW, 0:DOUT].set(b_diff[0])
    return gru, mlp


@jax.jit
def ddpm_forward(traj_p, traj_xy, noise, ab_t, packed):
    """Per-call data plumbing (pad, flatten, single fused data buffer) + pallas_call."""
    gru, mlp = packed
    pad_b = BP - B
    tp = jnp.pad(traj_p, ((0, 0), (0, pad_b), (0, 0)))
    txy = jnp.pad(traj_xy, ((0, 0), (0, pad_b), (0, 0)))
    nz = jnp.pad(noise, ((0, 0), (0, pad_b), (0, 0)))
    ab_pad = jnp.pad(ab_t, ((0, pad_b), (0, 0)), constant_values=1.0)
    ab_bc = jnp.broadcast_to(ab_pad[None], (S, BP, 1))
    zero = jnp.zeros((S, BP, 1), jnp.float32)
    # lanes: [traj_p(2) | traj_xy(2) | noise(2) | alpha_bar(1) | 0(1)]
    data = jnp.concatenate([tp, txy, nz, ab_bc, zero], axis=-1).reshape(SBP, DW)

    vmem = pl.BlockSpec(memory_space=pltpu.MemorySpace.VMEM)
    smem = pl.BlockSpec(memory_space=pltpu.MemorySpace.SMEM)
    out = pl.pallas_call(
        ddpm_kernel,
        out_shape=jax.ShapeDtypeStruct((1, 1), jnp.float32),
        in_specs=[vmem, vmem, vmem],
        out_specs=smem,                                    # scalar loss in SMEM
    )(data, gru, mlp)
    return out[0, 0]


def ddpm_reference(traj_p, traj_xy, noise, ab_t, p):
    """Pure-JAX reference with identical semantics for validation."""
    sqrt_ab = jnp.sqrt(ab_t)[None]
    sqrt_1mab = jnp.sqrt(1.0 - ab_t)[None]
    x_t = sqrt_ab * traj_p + sqrt_1mab * noise

    def step(h, x):
        gi = x @ p["wi"] + p["bi"]
        gh = h @ p["wh"] + p["bh"]
        r = jax.nn.sigmoid(gi[:, :H] + gh[:, :H])
        z = jax.nn.sigmoid(gi[:, H:2 * H] + gh[:, H:2 * H])
        n = jnp.tanh(gi[:, 2 * H:] + r * gh[:, 2 * H:])
        h_new = (1.0 - z) * n + z * h
        return h_new, h_new

    _, enc = lax.scan(step, jnp.zeros((B, H), jnp.float32), traj_p)
    target = enc.reshape(S * B, H) @ p["wT"] + p["bT"]
    h1 = jnp.maximum(
        x_t.reshape(S * B, F) @ p["w1p"]
        + traj_xy.reshape(S * B, XY) @ p["w1xy"] + p["b1"], 0.0)
    pred = h1 @ p["w2"] + p["b2"]
    return jnp.mean((pred - target) ** 2)


if __name__ == "__main__":
    key = jax.random.PRNGKey(0)
    keys = jax.random.split(key, 12)

    # DDPM schedule (as in __init__).
    betas = jnp.linspace(0.0001, 0.02, TIMESTEPS, dtype=jnp.float32)
    alphas = 1.0 - betas
    alpha_bar = jnp.cumprod(alphas)

    # Inputs (t / noise sampling done on host with jax.random).
    traj_p = jax.random.normal(keys[0], (S, B, F), jnp.float32)
    traj_xy = jax.random.normal(keys[1], (S, B, XY), jnp.float32)
    t = jax.random.randint(keys[2], (B,), 0, TIMESTEPS)
    noise = jax.random.normal(keys[3], (S, B, F), jnp.float32)
    ab_t = alpha_bar[t].reshape(B, 1).astype(jnp.float32)

    # Deterministic synthetic denoiser parameters.
    sc = 0.1
    params = {
        "wi": sc * jax.random.normal(keys[4], (F, 3 * H), jnp.float32),
        "wh": sc * jax.random.normal(keys[5], (H, 3 * H), jnp.float32),
        "bi": jnp.zeros((1, 3 * H), jnp.float32),
        "bh": jnp.zeros((1, 3 * H), jnp.float32),
        "wT": sc * jax.random.normal(keys[6], (H, DOUT), jnp.float32),
        "bT": sc * jax.random.normal(keys[7], (1, DOUT), jnp.float32),
        "w1p": sc * jax.random.normal(keys[8], (F, HM), jnp.float32),
        "w1xy": sc * jax.random.normal(keys[9], (XY, HM), jnp.float32),
        "b1": jnp.zeros((1, HM), jnp.float32),
        "w2": sc * jax.random.normal(keys[10], (HM, DOUT), jnp.float32),
        "b2": sc * jax.random.normal(keys[11], (1, DOUT), jnp.float32),
    }

    packed = jax.block_until_ready(prepare_params(params))   # hoisted, reused across calls

    loss = ddpm_forward(traj_p, traj_xy, noise, ab_t, packed)
    loss = jax.block_until_ready(loss)

    ref = jax.block_until_ready(
        ddpm_reference(traj_p, traj_xy, noise, ab_t, params))
    assert jnp.allclose(loss, ref, atol=1e-5, rtol=1e-5), (loss, ref)

    print("KERNEL_OK")
</pallas_src>

<mosaic_0001>
module attributes {stable_mosaic.version = 11 : i64} {
  func.func @ddpm_kernel(%arg0: memref<64x8xf32, #tpu.memory_space<vmem>>, %arg1: memref<48x96xf32, #tpu.memory_space<vmem>>, %arg2: memref<80x32xf32, #tpu.memory_space<vmem>>, %arg3: memref<1x1xf32, #tpu.memory_space<smem>>) attributes {dimension_semantics = [], scalar_prefetch = 0 : i64, scratch_operands = 0 : i64, tpu.core_type = #tpu.core_type<tc>} {
    %c0 = arith.constant 0 : index
    %c0_0 = arith.constant 0 : index
    %0 = vector.load %arg0[%c0, %c0_0] : memref<64x8xf32, #tpu.memory_space<vmem>>, vector<64x8xf32>
    %1 = vector.extract_strided_slice %0 {offsets = [0, 6], sizes = [64, 1], strides = [1, 1]} : vector<64x8xf32> to vector<64x1xf32>
    %2 = math.sqrt %1 : vector<64x1xf32>
    %cst = arith.constant 1.000000e+00 : f32
    %3 = vector.broadcast %cst : f32 to vector<64x1xf32>
    %4 = arith.subf %3, %1 : vector<64x1xf32>
    %5 = math.sqrt %4 : vector<64x1xf32>
    %6 = tpu.iota {dimensions = array<i32: 1>} : vector<64x4xi32>
    %c2_i32 = arith.constant 2 : i32
    %7 = vector.broadcast %c2_i32 : i32 to vector<64x4xi32>
    %8 = arith.cmpi slt, %6, %7 : vector<64x4xi32>
    %cst_1 = arith.constant 1.000000e+00 : f32
    %9 = vector.shape_cast %2 : vector<64x1xf32> to vector<64x1xf32>
    %10 = vector.broadcast %9 : vector<64x1xf32> to vector<64x4xf32>
    %11 = vector.broadcast %cst_1 : f32 to vector<64x4xf32>
    %12 = arith.select %8, %10, %11 : vector<64x4xi1>, vector<64x4xf32>
    %cst_2 = arith.constant 0.000000e+00 : f32
    %13 = vector.shape_cast %5 : vector<64x1xf32> to vector<64x1xf32>
    %14 = vector.broadcast %13 : vector<64x1xf32> to vector<64x4xf32>
    %15 = vector.broadcast %cst_2 : f32 to vector<64x4xf32>
    %16 = arith.select %8, %14, %15 : vector<64x4xi1>, vector<64x4xf32>
    %17 = vector.extract_strided_slice %0 {offsets = [0, 0], sizes = [64, 4], strides = [1, 1]} : vector<64x8xf32> to vector<64x4xf32>
    %18 = arith.mulf %12, %17 : vector<64x4xf32>
    %19 = vector.extract_strided_slice %0 {offsets = [0, 4], sizes = [64, 4], strides = [1, 1]} : vector<64x8xf32> to vector<64x4xf32>
    %20 = arith.mulf %16, %19 : vector<64x4xf32>
    %21 = arith.addf %18, %20 : vector<64x4xf32>
    %c0_3 = arith.constant 0 : index
    %c0_4 = arith.constant 0 : index
    %22 = vector.load %arg1[%c0_3, %c0_4] : memref<48x96xf32, #tpu.memory_space<vmem>>, vector<8x96xf32>
    %c8 = arith.constant 8 : index
    %c0_5 = arith.constant 0 : index
    %23 = vector.load %arg1[%c8, %c0_5] : memref<48x96xf32, #tpu.memory_space<vmem>>, vector<32x96xf32>
    %c40 = arith.constant 40 : index
    %c0_6 = arith.constant 0 : index
    %24 = vector.load %arg1[%c40, %c0_6] : memref<48x96xf32, #tpu.memory_space<vmem>>, vector<1x96xf32>
    %c41 = arith.constant 41 : index
    %c0_7 = arith.constant 0 : index
    %25 = vector.load %arg1[%c41, %c0_7] : memref<48x96xf32, #tpu.memory_space<vmem>>, vector<1x96xf32>
    %cst_8 = arith.constant dense<0.000000e+00> : vector<64x96xf32>
    %26 = tpu.matmul %0, %22, %cst_8 {dimension_numbers = #tpu.dot_dimension_numbers<[1], [0], [0], [1], [0, 0, 1, 1], [], []>} : vector<64x8xf32>, vector<8x96xf32>, vector<64x96xf32> -> vector<64x96xf32>
    %27 = vector.broadcast %24 : vector<1x96xf32> to vector<64x96xf32>
    %28 = arith.addf %26, %27 : vector<64x96xf32>
    %cst_9 = arith.constant 0.000000e+00 : f32
    %29 = vector.broadcast %cst_9 : f32 to vector<8x32xf32>
    %cst_10 = arith.constant dense<0.000000e+00> : vector<8x96xf32>
    %30 = tpu.matmul %29, %23, %cst_10 {dimension_numbers = #tpu.dot_dimension_numbers<[1], [0], [0], [1], [0, 0, 1, 1], [], []>} : vector<8x32xf32>, vector<32x96xf32>, vector<8x96xf32> -> vector<8x96xf32>
    %31 = vector.broadcast %25 : vector<1x96xf32> to vector<8x96xf32>
    %32 = arith.addf %30, %31 : vector<8x96xf32>
    %33 = vector.extract_strided_slice %28 {offsets = [0, 0], sizes = [8, 96], strides = [1, 1]} : vector<64x96xf32> to vector<8x96xf32>
    %34 = vector.extract_strided_slice %33 {offsets = [0, 0], sizes = [8, 32], strides = [1, 1]} : vector<8x96xf32> to vector<8x32xf32>
    %35 = vector.extract_strided_slice %32 {offsets = [0, 0], sizes = [8, 32], strides = [1, 1]} : vector<8x96xf32> to vector<8x32xf32>
    %36 = arith.addf %34, %35 : vector<8x32xf32>
    %37 = arith.negf %36 : vector<8x32xf32>
    %38 = math.exp %37 : vector<8x32xf32>
    %cst_11 = arith.constant 1.000000e+00 : f32
    %39 = vector.broadcast %cst_11 : f32 to vector<8x32xf32>
    %40 = arith.addf %39, %38 : vector<8x32xf32>
    %41 = arith.divf %39, %40 : vector<8x32xf32>
    %42 = vector.extract_strided_slice %33 {offsets = [0, 32], sizes = [8, 32], strides = [1, 1]} : vector<8x96xf32> to vector<8x32xf32>
    %43 = vector.extract_strided_slice %32 {offsets = [0, 32], sizes = [8, 32], strides = [1, 1]} : vector<8x96xf32> to vector<8x32xf32>
    %44 = arith.addf %42, %43 : vector<8x32xf32>
    %45 = arith.negf %44 : vector<8x32xf32>
    %46 = math.exp %45 : vector<8x32xf32>
    %cst_12 = arith.constant 1.000000e+00 : f32
    %47 = vector.broadcast %cst_12 : f32 to vector<8x32xf32>
    %48 = arith.addf %47, %46 : vector<8x32xf32>
    %49 = arith.divf %47, %48 : vector<8x32xf32>
    %50 = vector.extract_strided_slice %33 {offsets = [0, 64], sizes = [8, 32], strides = [1, 1]} : vector<8x96xf32> to vector<8x32xf32>
    %51 = vector.extract_strided_slice %32 {offsets = [0, 64], sizes = [8, 32], strides = [1, 1]} : vector<8x96xf32> to vector<8x32xf32>
    %52 = arith.mulf %41, %51 : vector<8x32xf32>
    %53 = arith.addf %50, %52 : vector<8x32xf32>
    %54 = math.tanh %53 : vector<8x32xf32>
    %cst_13 = arith.constant 1.000000e+00 : f32
    %55 = vector.broadcast %cst_13 : f32 to vector<8x32xf32>
    %56 = arith.subf %55, %49 : vector<8x32xf32>
    %57 = arith.mulf %56, %54 : vector<8x32xf32>
    %58 = arith.mulf %49, %29 : vector<8x32xf32>
    %59 = arith.addf %57, %58 : vector<8x32xf32>
    %cst_14 = arith.constant dense<0.000000e+00> : vector<8x96xf32>
    %60 = tpu.matmul %59, %23, %cst_14 {dimension_numbers = #tpu.dot_dimension_numbers<[1], [0], [0], [1], [0, 0, 1, 1], [], []>} : vector<8x32xf32>, vector<32x96xf32>, vector<8x96xf32> -> vector<8x96xf32>
    %61 = vector.broadcast %25 : vector<1x96xf32> to vector<8x96xf32>
    %62 = arith.addf %60, %61 : vector<8x96xf32>
    %63 = vector.extract_strided_slice %28 {offsets = [8, 0], sizes = [8, 96], strides = [1, 1]} : vector<64x96xf32> to vector<8x96xf32>
    %64 = vector.extract_strided_slice %63 {offsets = [0, 0], sizes = [8, 32], strides = [1, 1]} : vector<8x96xf32> to vector<8x32xf32>
    %65 = vector.extract_strided_slice %62 {offsets = [0, 0], sizes = [8, 32], strides = [1, 1]} : vector<8x96xf32> to vector<8x32xf32>
    %66 = arith.addf %64, %65 : vector<8x32xf32>
    %67 = arith.negf %66 : vector<8x32xf32>
    %68 = math.exp %67 : vector<8x32xf32>
    %cst_15 = arith.constant 1.000000e+00 : f32
    %69 = vector.broadcast %cst_15 : f32 to vector<8x32xf32>
    %70 = arith.addf %69, %68 : vector<8x32xf32>
    %71 = arith.divf %69, %70 : vector<8x32xf32>
    %72 = vector.extract_strided_slice %63 {offsets = [0, 32], sizes = [8, 32], strides = [1, 1]} : vector<8x96xf32> to vector<8x32xf32>
    %73 = vector.extract_strided_slice %62 {offsets = [0, 32], sizes = [8, 32], strides = [1, 1]} : vector<8x96xf32> to vector<8x32xf32>
    %74 = arith.addf %72, %73 : vector<8x32xf32>
    %75 = arith.negf %74 : vector<8x32xf32>
    %76 = math.exp %75 : vector<8x32xf32>
    %cst_16 = arith.constant 1.000000e+00 : f32
    %77 = vector.broadcast %cst_16 : f32 to vector<8x32xf32>
    %78 = arith.addf %77, %76 : vector<8x32xf32>
    %79 = arith.divf %77, %78 : vector<8x32xf32>
    %80 = vector.extract_strided_slice %63 {offsets = [0, 64], sizes = [8, 32], strides = [1, 1]} : vector<8x96xf32> to vector<8x32xf32>
    %81 = vector.extract_strided_slice %62 {offsets = [0, 64], sizes = [8, 32], strides = [1, 1]} : vector<8x96xf32> to vector<8x32xf32>
    %82 = arith.mulf %71, %81 : vector<8x32xf32>
    %83 = arith.addf %80, %82 : vector<8x32xf32>
    %84 = math.tanh %83 : vector<8x32xf32>
    %cst_17 = arith.constant 1.000000e+00 : f32
    %85 = vector.broadcast %cst_17 : f32 to vector<8x32xf32>
    %86 = arith.subf %85, %79 : vector<8x32xf32>
    %87 = arith.mulf %86, %84 : vector<8x32xf32>
    %88 = arith.mulf %79, %59 : vector<8x32xf32>
    %89 = arith.addf %87, %88 : vector<8x32xf32>
    %cst_18 = arith.constant dense<0.000000e+00> : vector<8x96xf32>
    %90 = tpu.matmul %89, %23, %cst_18 {dimension_numbers = #tpu.dot_dimension_numbers<[1], [0], [0], [1], [0, 0, 1, 1], [], []>} : vector<8x32xf32>, vector<32x96xf32>, vector<8x96xf32> -> vector<8x96xf32>
    %91 = vector.broadcast %25 : vector<1x96xf32> to vector<8x96xf32>
    %92 = arith.addf %90, %91 : vector<8x96xf32>
    %93 = vector.extract_strided_slice %28 {offsets = [16, 0], sizes = [8, 96], strides = [1, 1]} : vector<64x96xf32> to vector<8x96xf32>
    %94 = vector.extract_strided_slice %93 {offsets = [0, 0], sizes = [8, 32], strides = [1, 1]} : vector<8x96xf32> to vector<8x32xf32>
    %95 = vector.extract_strided_slice %92 {offsets = [0, 0], sizes = [8, 32], strides = [1, 1]} : vector<8x96xf32> to vector<8x32xf32>
    %96 = arith.addf %94, %95 : vector<8x32xf32>
    %97 = arith.negf %96 : vector<8x32xf32>
    %98 = math.exp %97 : vector<8x32xf32>
    %cst_19 = arith.constant 1.000000e+00 : f32
    %99 = vector.broadcast %cst_19 : f32 to vector<8x32xf32>
    %100 = arith.addf %99, %98 : vector<8x32xf32>
    %101 = arith.divf %99, %100 : vector<8x32xf32>
    %102 = vector.extract_strided_slice %93 {offsets = [0, 32], sizes = [8, 32], strides = [1, 1]} : vector<8x96xf32> to vector<8x32xf32>
    %103 = vector.extract_strided_slice %92 {offsets = [0, 32], sizes = [8, 32], strides = [1, 1]} : vector<8x96xf32> to vector<8x32xf32>
    %104 = arith.addf %102, %103 : vector<8x32xf32>
    %105 = arith.negf %104 : vector<8x32xf32>
    %106 = math.exp %105 : vector<8x32xf32>
    %cst_20 = arith.constant 1.000000e+00 : f32
    %107 = vector.broadcast %cst_20 : f32 to vector<8x32xf32>
    %108 = arith.addf %107, %106 : vector<8x32xf32>
    %109 = arith.divf %107, %108 : vector<8x32xf32>
    %110 = vector.extract_strided_slice %93 {offsets = [0, 64], sizes = [8, 32], strides = [1, 1]} : vector<8x96xf32> to vector<8x32xf32>
    %111 = vector.extract_strided_slice %92 {offsets = [0, 64], sizes = [8, 32], strides = [1, 1]} : vector<8x96xf32> to vector<8x32xf32>
    %112 = arith.mulf %101, %111 : vector<8x32xf32>
    %113 = arith.addf %110, %112 : vector<8x32xf32>
    %114 = math.tanh %113 : vector<8x32xf32>
    %cst_21 = arith.constant 1.000000e+00 : f32
    %115 = vector.broadcast %cst_21 : f32 to vector<8x32xf32>
    %116 = arith.subf %115, %109 : vector<8x32xf32>
    %117 = arith.mulf %116, %114 : vector<8x32xf32>
    %118 = arith.mulf %109, %89 : vector<8x32xf32>
    %119 = arith.addf %117, %118 : vector<8x32xf32>
    %cst_22 = arith.constant dense<0.000000e+00> : vector<8x96xf32>
    %120 = tpu.matmul %119, %23, %cst_22 {dimension_numbers = #tpu.dot_dimension_numbers<[1], [0], [0], [1], [0, 0, 1, 1], [], []>} : vector<8x32xf32>, vector<32x96xf32>, vector<8x96xf32> -> vector<8x96xf32>
    %121 = vector.broadcast %25 : vector<1x96xf32> to vector<8x96xf32>
    %122 = arith.addf %120, %121 : vector<8x96xf32>
    %123 = vector.extract_strided_slice %28 {offsets = [24, 0], sizes = [8, 96], strides = [1, 1]} : vector<64x96xf32> to vector<8x96xf32>
    %124 = vector.extract_strided_slice %123 {offsets = [0, 0], sizes = [8, 32], strides = [1, 1]} : vector<8x96xf32> to vector<8x32xf32>
    %125 = vector.extract_strided_slice %122 {offsets = [0, 0], sizes = [8, 32], strides = [1, 1]} : vector<8x96xf32> to vector<8x32xf32>
    %126 = arith.addf %124, %125 : vector<8x32xf32>
    %127 = arith.negf %126 : vector<8x32xf32>
    %128 = math.exp %127 : vector<8x32xf32>
    %cst_23 = arith.constant 1.000000e+00 : f32
    %129 = vector.broadcast %cst_23 : f32 to vector<8x32xf32>
    %130 = arith.addf %129, %128 : vector<8x32xf32>
    %131 = arith.divf %129, %130 : vector<8x32xf32>
    %132 = vector.extract_strided_slice %123 {offsets = [0, 32], sizes = [8, 32], strides = [1, 1]} : vector<8x96xf32> to vector<8x32xf32>
    %133 = vector.extract_strided_slice %122 {offsets = [0, 32], sizes = [8, 32], strides = [1, 1]} : vector<8x96xf32> to vector<8x32xf32>
    %134 = arith.addf %132, %133 : vector<8x32xf32>
    %135 = arith.negf %134 : vector<8x32xf32>
    %136 = math.exp %135 : vector<8x32xf32>
    %cst_24 = arith.constant 1.000000e+00 : f32
    %137 = vector.broadcast %cst_24 : f32 to vector<8x32xf32>
    %138 = arith.addf %137, %136 : vector<8x32xf32>
    %139 = arith.divf %137, %138 : vector<8x32xf32>
    %140 = vector.extract_strided_slice %123 {offsets = [0, 64], sizes = [8, 32], strides = [1, 1]} : vector<8x96xf32> to vector<8x32xf32>
    %141 = vector.extract_strided_slice %122 {offsets = [0, 64], sizes = [8, 32], strides = [1, 1]} : vector<8x96xf32> to vector<8x32xf32>
    %142 = arith.mulf %131, %141 : vector<8x32xf32>
    %143 = arith.addf %140, %142 : vector<8x32xf32>
    %144 = math.tanh %143 : vector<8x32xf32>
    %cst_25 = arith.constant 1.000000e+00 : f32
    %145 = vector.broadcast %cst_25 : f32 to vector<8x32xf32>
    %146 = arith.subf %145, %139 : vector<8x32xf32>
    %147 = arith.mulf %146, %144 : vector<8x32xf32>
    %148 = arith.mulf %139, %119 : vector<8x32xf32>
    %149 = arith.addf %147, %148 : vector<8x32xf32>
    %cst_26 = arith.constant dense<0.000000e+00> : vector<8x96xf32>
    %150 = tpu.matmul %149, %23, %cst_26 {dimension_numbers = #tpu.dot_dimension_numbers<[1], [0], [0], [1], [0, 0, 1, 1], [], []>} : vector<8x32xf32>, vector<32x96xf32>, vector<8x96xf32> -> vector<8x96xf32>
    %151 = vector.broadcast %25 : vector<1x96xf32> to vector<8x96xf32>
    %152 = arith.addf %150, %151 : vector<8x96xf32>
    %153 = vector.extract_strided_slice %28 {offsets = [32, 0], sizes = [8, 96], strides = [1, 1]} : vector<64x96xf32> to vector<8x96xf32>
    %154 = vector.extract_strided_slice %153 {offsets = [0, 0], sizes = [8, 32], strides = [1, 1]} : vector<8x96xf32> to vector<8x32xf32>
    %155 = vector.extract_strided_slice %152 {offsets = [0, 0], sizes = [8, 32], strides = [1, 1]} : vector<8x96xf32> to vector<8x32xf32>
    %156 = arith.addf %154, %155 : vector<8x32xf32>
    %157 = arith.negf %156 : vector<8x32xf32>
    %158 = math.exp %157 : vector<8x32xf32>
    %cst_27 = arith.constant 1.000000e+00 : f32
    %159 = vector.broadcast %cst_27 : f32 to vector<8x32xf32>
    %160 = arith.addf %159, %158 : vector<8x32xf32>
    %161 = arith.divf %159, %160 : vector<8x32xf32>
    %162 = vector.extract_strided_slice %153 {offsets = [0, 32], sizes = [8, 32], strides = [1, 1]} : vector<8x96xf32> to vector<8x32xf32>
    %163 = vector.extract_strided_slice %152 {offsets = [0, 32], sizes = [8, 32], strides = [1, 1]} : vector<8x96xf32> to vector<8x32xf32>
    %164 = arith.addf %162, %163 : vector<8x32xf32>
    %165 = arith.negf %164 : vector<8x32xf32>
    %166 = math.exp %165 : vector<8x32xf32>
    %cst_28 = arith.constant 1.000000e+00 : f32
    %167 = vector.broadcast %cst_28 : f32 to vector<8x32xf32>
    %168 = arith.addf %167, %166 : vector<8x32xf32>
    %169 = arith.divf %167, %168 : vector<8x32xf32>
    %170 = vector.extract_strided_slice %153 {offsets = [0, 64], sizes = [8, 32], strides = [1, 1]} : vector<8x96xf32> to vector<8x32xf32>
    %171 = vector.extract_strided_slice %152 {offsets = [0, 64], sizes = [8, 32], strides = [1, 1]} : vector<8x96xf32> to vector<8x32xf32>
    %172 = arith.mulf %161, %171 : vector<8x32xf32>
    %173 = arith.addf %170, %172 : vector<8x32xf32>
    %174 = math.tanh %173 : vector<8x32xf32>
    %cst_29 = arith.constant 1.000000e+00 : f32
    %175 = vector.broadcast %cst_29 : f32 to vector<8x32xf32>
    %176 = arith.subf %175, %169 : vector<8x32xf32>
    %177 = arith.mulf %176, %174 : vector<8x32xf32>
    %178 = arith.mulf %169, %149 : vector<8x32xf32>
    %179 = arith.addf %177, %178 : vector<8x32xf32>
    %cst_30 = arith.constant dense<0.000000e+00> : vector<8x96xf32>
    %180 = tpu.matmul %179, %23, %cst_30 {dimension_numbers = #tpu.dot_dimension_numbers<[1], [0], [0], [1], [0, 0, 1, 1], [], []>} : vector<8x32xf32>, vector<32x96xf32>, vector<8x96xf32> -> vector<8x96xf32>
    %181 = vector.broadcast %25 : vector<1x96xf32> to vector<8x96xf32>
    %182 = arith.addf %180, %181 : vector<8x96xf32>
    %183 = vector.extract_strided_slice %28 {offsets = [40, 0], sizes = [8, 96], strides = [1, 1]} : vector<64x96xf32> to vector<8x96xf32>
    %184 = vector.extract_strided_slice %183 {offsets = [0, 0], sizes = [8, 32], strides = [1, 1]} : vector<8x96xf32> to vector<8x32xf32>
    %185 = vector.extract_strided_slice %182 {offsets = [0, 0], sizes = [8, 32], strides = [1, 1]} : vector<8x96xf32> to vector<8x32xf32>
    %186 = arith.addf %184, %185 : vector<8x32xf32>
    %187 = arith.negf %186 : vector<8x32xf32>
    %188 = math.exp %187 : vector<8x32xf32>
    %cst_31 = arith.constant 1.000000e+00 : f32
    %189 = vector.broadcast %cst_31 : f32 to vector<8x32xf32>
    %190 = arith.addf %189, %188 : vector<8x32xf32>
    %191 = arith.divf %189, %190 : vector<8x32xf32>
    %192 = vector.extract_strided_slice %183 {offsets = [0, 32], sizes = [8, 32], strides = [1, 1]} : vector<8x96xf32> to vector<8x32xf32>
    %193 = vector.extract_strided_slice %182 {offsets = [0, 32], sizes = [8, 32], strides = [1, 1]} : vector<8x96xf32> to vector<8x32xf32>
    %194 = arith.addf %192, %193 : vector<8x32xf32>
    %195 = arith.negf %194 : vector<8x32xf32>
    %196 = math.exp %195 : vector<8x32xf32>
    %cst_32 = arith.constant 1.000000e+00 : f32
    %197 = vector.broadcast %cst_32 : f32 to vector<8x32xf32>
    %198 = arith.addf %197, %196 : vector<8x32xf32>
    %199 = arith.divf %197, %198 : vector<8x32xf32>
    %200 = vector.extract_strided_slice %183 {offsets = [0, 64], sizes = [8, 32], strides = [1, 1]} : vector<8x96xf32> to vector<8x32xf32>
    %201 = vector.extract_strided_slice %182 {offsets = [0, 64], sizes = [8, 32], strides = [1, 1]} : vector<8x96xf32> to vector<8x32xf32>
    %202 = arith.mulf %191, %201 : vector<8x32xf32>
    %203 = arith.addf %200, %202 : vector<8x32xf32>
    %204 = math.tanh %203 : vector<8x32xf32>
    %cst_33 = arith.constant 1.000000e+00 : f32
    %205 = vector.broadcast %cst_33 : f32 to vector<8x32xf32>
    %206 = arith.subf %205, %199 : vector<8x32xf32>
    %207 = arith.mulf %206, %204 : vector<8x32xf32>
    %208 = arith.mulf %199, %179 : vector<8x32xf32>
    %209 = arith.addf %207, %208 : vector<8x32xf32>
    %cst_34 = arith.constant dense<0.000000e+00> : vector<8x96xf32>
    %210 = tpu.matmul %209, %23, %cst_34 {dimension_numbers = #tpu.dot_dimension_numbers<[1], [0], [0], [1], [0, 0, 1, 1], [], []>} : vector<8x32xf32>, vector<32x96xf32>, vector<8x96xf32> -> vector<8x96xf32>
    %211 = vector.broadcast %25 : vector<1x96xf32> to vector<8x96xf32>
    %212 = arith.addf %210, %211 : vector<8x96xf32>
    %213 = vector.extract_strided_slice %28 {offsets = [48, 0], sizes = [8, 96], strides = [1, 1]} : vector<64x96xf32> to vector<8x96xf32>
    %214 = vector.extract_strided_slice %213 {offsets = [0, 0], sizes = [8, 32], strides = [1, 1]} : vector<8x96xf32> to vector<8x32xf32>
    %215 = vector.extract_strided_slice %212 {offsets = [0, 0], sizes = [8, 32], strides = [1, 1]} : vector<8x96xf32> to vector<8x32xf32>
    %216 = arith.addf %214, %215 : vector<8x32xf32>
    %217 = arith.negf %216 : vector<8x32xf32>
    %218 = math.exp %217 : vector<8x32xf32>
    %cst_35 = arith.constant 1.000000e+00 : f32
    %219 = vector.broadcast %cst_35 : f32 to vector<8x32xf32>
    %220 = arith.addf %219, %218 : vector<8x32xf32>
    %221 = arith.divf %219, %220 : vector<8x32xf32>
    %222 = vector.extract_strided_slice %213 {offsets = [0, 32], sizes = [8, 32], strides = [1, 1]} : vector<8x96xf32> to vector<8x32xf32>
    %223 = vector.extract_strided_slice %212 {offsets = [0, 32], sizes = [8, 32], strides = [1, 1]} : vector<8x96xf32> to vector<8x32xf32>
    %224 = arith.addf %222, %223 : vector<8x32xf32>
    %225 = arith.negf %224 : vector<8x32xf32>
    %226 = math.exp %225 : vector<8x32xf32>
    %cst_36 = arith.constant 1.000000e+00 : f32
    %227 = vector.broadcast %cst_36 : f32 to vector<8x32xf32>
    %228 = arith.addf %227, %226 : vector<8x32xf32>
    %229 = arith.divf %227, %228 : vector<8x32xf32>
    %230 = vector.extract_strided_slice %213 {offsets = [0, 64], sizes = [8, 32], strides = [1, 1]} : vector<8x96xf32> to vector<8x32xf32>
    %231 = vector.extract_strided_slice %212 {offsets = [0, 64], sizes = [8, 32], strides = [1, 1]} : vector<8x96xf32> to vector<8x32xf32>
    %232 = arith.mulf %221, %231 : vector<8x32xf32>
    %233 = arith.addf %230, %232 : vector<8x32xf32>
    %234 = math.tanh %233 : vector<8x32xf32>
    %cst_37 = arith.constant 1.000000e+00 : f32
    %235 = vector.broadcast %cst_37 : f32 to vector<8x32xf32>
    %236 = arith.subf %235, %229 : vector<8x32xf32>
    %237 = arith.mulf %236, %234 : vector<8x32xf32>
    %238 = arith.mulf %229, %209 : vector<8x32xf32>
    %239 = arith.addf %237, %238 : vector<8x32xf32>
    %cst_38 = arith.constant dense<0.000000e+00> : vector<8x96xf32>
    %240 = tpu.matmul %239, %23, %cst_38 {dimension_numbers = #tpu.dot_dimension_numbers<[1], [0], [0], [1], [0, 0, 1, 1], [], []>} : vector<8x32xf32>, vector<32x96xf32>, vector<8x96xf32> -> vector<8x96xf32>
    %241 = vector.broadcast %25 : vector<1x96xf32> to vector<8x96xf32>
    %242 = arith.addf %240, %241 : vector<8x96xf32>
    %243 = vector.extract_strided_slice %28 {offsets = [56, 0], sizes = [8, 96], strides = [1, 1]} : vector<64x96xf32> to vector<8x96xf32>
    %244 = vector.extract_strided_slice %243 {offsets = [0, 0], sizes = [8, 32], strides = [1, 1]} : vector<8x96xf32> to vector<8x32xf32>
    %245 = vector.extract_strided_slice %242 {offsets = [0, 0], sizes = [8, 32], strides = [1, 1]} : vector<8x96xf32> to vector<8x32xf32>
    %246 = arith.addf %244, %245 : vector<8x32xf32>
    %247 = arith.negf %246 : vector<8x32xf32>
    %248 = math.exp %247 : vector<8x32xf32>
    %cst_39 = arith.constant 1.000000e+00 : f32
    %249 = vector.broadcast %cst_39 : f32 to vector<8x32xf32>
    %250 = arith.addf %249, %248 : vector<8x32xf32>
    %251 = arith.divf %249, %250 : vector<8x32xf32>
    %252 = vector.extract_strided_slice %243 {offsets = [0, 32], sizes = [8, 32], strides = [1, 1]} : vector<8x96xf32> to vector<8x32xf32>
    %253 = vector.extract_strided_slice %242 {offsets = [0, 32], sizes = [8, 32], strides = [1, 1]} : vector<8x96xf32> to vector<8x32xf32>
    %254 = arith.addf %252, %253 : vector<8x32xf32>
    %255 = arith.negf %254 : vector<8x32xf32>
    %256 = math.exp %255 : vector<8x32xf32>
    %cst_40 = arith.constant 1.000000e+00 : f32
    %257 = vector.broadcast %cst_40 : f32 to vector<8x32xf32>
    %258 = arith.addf %257, %256 : vector<8x32xf32>
    %259 = arith.divf %257, %258 : vector<8x32xf32>
    %260 = vector.extract_strided_slice %243 {offsets = [0, 64], sizes = [8, 32], strides = [1, 1]} : vector<8x96xf32> to vector<8x32xf32>
    %261 = vector.extract_strided_slice %242 {offsets = [0, 64], sizes = [8, 32], strides = [1, 1]} : vector<8x96xf32> to vector<8x32xf32>
    %262 = arith.mulf %251, %261 : vector<8x32xf32>
    %263 = arith.addf %260, %262 : vector<8x32xf32>
    %264 = math.tanh %263 : vector<8x32xf32>
    %cst_41 = arith.constant 1.000000e+00 : f32
    %265 = vector.broadcast %cst_41 : f32 to vector<8x32xf32>
    %266 = arith.subf %265, %259 : vector<8x32xf32>
    %267 = arith.mulf %266, %264 : vector<8x32xf32>
    %268 = arith.mulf %259, %239 : vector<8x32xf32>
    %269 = arith.addf %267, %268 : vector<8x32xf32>
    %270 = tpu.concatenate %59, %89, %119, %149, %179, %209, %239, %269 in 0 : vector<8x32xf32>, vector<8x32xf32>, vector<8x32xf32>, vector<8x32xf32>, vector<8x32xf32>, vector<8x32xf32>, vector<8x32xf32>, vector<8x32xf32> -> vector<64x32xf32>
    %c0_42 = arith.constant 0 : index
    %c0_43 = arith.constant 0 : index
    %271 = vector.load %arg2[%c0_42, %c0_43] : memref<80x32xf32, #tpu.memory_space<vmem>>, vector<4x32xf32>
    %c4 = arith.constant 4 : index
    %c0_44 = arith.constant 0 : index
    %272 = vector.load %arg2[%c4, %c0_44] : memref<80x32xf32, #tpu.memory_space<vmem>>, vector<1x32xf32>
    %cst_45 = arith.constant dense<0.000000e+00> : vector<64x32xf32>
    %273 = tpu.matmul %21, %271, %cst_45 {dimension_numbers = #tpu.dot_dimension_numbers<[1], [0], [0], [1], [0, 0, 1, 1], [], []>} : vector<64x4xf32>, vector<4x32xf32>, vector<64x32xf32> -> vector<64x32xf32>
    %274 = vector.broadcast %272 : vector<1x32xf32> to vector<64x32xf32>
    %275 = arith.addf %273, %274 : vector<64x32xf32>
    %cst_46 = arith.constant 0.000000e+00 : f32
    %276 = vector.broadcast %cst_46 : f32 to vector<64x32xf32>
    %277 = arith.maximumf %275, %276 : vector<64x32xf32>
    %c8_47 = arith.constant 8 : index
    %c0_48 = arith.constant 0 : index
    %278 = vector.load %arg2[%c8_47, %c0_48] : memref<80x32xf32, #tpu.memory_space<vmem>>, vector<64x32xf32>
    %c72 = arith.constant 72 : index
    %c0_49 = arith.constant 0 : index
    %279 = vector.load %arg2[%c72, %c0_49] : memref<80x32xf32, #tpu.memory_space<vmem>>, vector<1x32xf32>
    %280 = tpu.concatenate %277, %270 in 1 : vector<64x32xf32>, vector<64x32xf32> -> vector<64x64xf32>
    %cst_50 = arith.constant dense<0.000000e+00> : vector<64x32xf32>
    %281 = tpu.matmul %280, %278, %cst_50 {dimension_numbers = #tpu.dot_dimension_numbers<[1], [0], [0], [1], [0, 0, 1, 1], [], []>} : vector<64x64xf32>, vector<64x32xf32>, vector<64x32xf32> -> vector<64x32xf32>
    %282 = vector.broadcast %279 : vector<1x32xf32> to vector<64x32xf32>
    %283 = arith.addf %281, %282 : vector<64x32xf32>
    %284 = tpu.iota {dimensions = array<i32: 0>} : vector<64x32xi32>
    %c7_i32 = arith.constant 7 : i32
    %285 = vector.broadcast %c7_i32 : i32 to vector<64x32xi32>
    %286 = arith.andi %284, %285 : vector<64x32xi32>
    %c4_i32 = arith.constant 4 : i32
    %287 = vector.broadcast %c4_i32 : i32 to vector<64x32xi32>
    %288 = arith.cmpi slt, %286, %287 : vector<64x32xi32>
    %cst_51 = arith.constant 0.000000e+00 : f32
    %289 = vector.broadcast %cst_51 : f32 to vector<64x32xf32>
    %290 = arith.select %288, %283, %289 : vector<64x32xi1>, vector<64x32xf32>
    %291 = arith.mulf %290, %290 : vector<64x32xf32>
    %292 = vector.shape_cast %291 : vector<64x32xf32> to vector<1x64x32xf32>
    %cst_52 = arith.constant dense<0.000000e+00> : vector<1xf32>
    %293 = vector.multi_reduction <add>, %292, %cst_52 [1, 2] : vector<1x64x32xf32> to vector<1xf32>
    %294 = vector.shape_cast %293 : vector<1xf32> to vector<1x1x1xf32>
    %295 = vector.extract %294[0, 0, 0] : f32 from vector<1x1x1xf32>
    %cst_53 = arith.constant 0.001953125 : f32
    %296 = arith.mulf %295, %cst_53 : f32
    %c0_54 = arith.constant 0 : index
    %c0_55 = arith.constant 0 : index
    %297 = memref.load %arg3[%c0_54, %c0_55] : memref<1x1xf32, #tpu.memory_space<smem>>
    memref.store %296, %arg3[%c0_54, %c0_55] : memref<1x1xf32, #tpu.memory_space<smem>>
    return
  }
}

</mosaic_0001>

<llo_original>
// kernel: ddpm_forward.1
$region0: #{ddpm_forward.1}
  #allocation0 [shape = 'u32[]', space=smem, size = 0x4, offset = 0x4, fixed_abs, tag = 'smem constant byte address 0x4 - core index']
  #allocation1 [shape = 'u32[144,128]{1,0:T(1,128)}', space=vmem, size = 0x12000, scoped, tag = 'internal scratch']
  %s0 = inlined_call_operand.vmem [shape: f32[64,8], index: 0, kind: input, shape index: {}]
  %s1 = inlined_call_operand.vmem [shape: f32[48,96], index: 1, kind: input, shape index: {}]
  %s2 = inlined_call_operand.vmem [shape: f32[80,32], index: 2, kind: input, shape index: {}]
  %s3 = inlined_call_operand.hbm [shape: f32[1,1], index: 3, kind: output, shape index: {}]
  %s4 = sld [smem:[#allocation0]]
  $region22: #{ddpm_forward.1} parent=0
    _
  %s6 = ssub.s32 1, %s4
  %s7 = scalar_select 0, %s6, %s4
  $region1: #{ddpm_forward.1} parent=0
    #allocation2 [shape = 'u8[512]{0}', space=smem, size = 0x200, scoped, tag = 'output window, operand 0, single buffered']
    #allocation3 [shape = 's32[1]{0}', space=sflag, size = 0x4, scoped, tag = 'scoped memory for ddpm_forward.1']
    %8 = vsyncpa [#allocation3], 0
    // Predicated region
    $region2: #{ddpm_forward.1} parent=1 // pred_check
      _
    $region3: #{ddpm_forward.1} parent=1 // pred_check_branch
      %10 = sbr.rel (0) target = $region5
    $region4: #{ddpm_forward.1} parent=1 // pred_region
      _
    $region5: #{ddpm_forward.1} parent=1 // pred_fallthru
      _
    // Predicated region
    $region6: #{ddpm_forward.1} parent=1 // pred_check
      _
    $region7: #{ddpm_forward.1} parent=1 // pred_check_branch
      %12 = sbr.rel (0) target = $region9
    $region8: #{ddpm_forward.1} parent=1 // pred_region
      _
    $region9: #{ddpm_forward.1} parent=1 // pred_fallthru
      _
    // Predicated region
    $region10: #{ddpm_forward.1} parent=1 // pred_check
      _
    $region11: #{ddpm_forward.1} parent=1 // pred_check_branch
      %14 = sbr.rel (0) target = $region13
    $region12: #{ddpm_forward.1} parent=1 // pred_region
      _
    $region13: #{ddpm_forward.1} parent=1 // pred_fallthru
      _
    %v15 = vld [vmem:[%s0] sm:$0xff]
    %v16 = vld [vmem:[%s0 + $0x8] sm:$0xff]
    %v17 = vld [vmem:[%s0 + $0x10] sm:$0xff]
    %v18 = vld [vmem:[%s0 + $0x18] sm:$0xff]
    %v19 = vld [vmem:[%s0 + $0x20] sm:$0xff]
    %v20 = vld [vmem:[%s0 + $0x28] sm:$0xff]
    %v21 = vld [vmem:[%s0 + $0x30] sm:$0xff]
    %v22 = vld [vmem:[%s0 + $0x38] sm:$0xff]
    %v23 = vrsqrt.pop %v15
    %v24 = vmul.f32 %v15, %v23
    %vm25 = vcmp.eq.f32.partialorder %v15, inf
    %v26 = vsel %vm25, %v15, %v24
    %vm27 = vcmp.eq.f32.partialorder %v15, 0.0
    %v28 = vand.u32 %v15, 2147483648
    %v29 = vsel %vm27, %v28, %v26
    %v30 = vrsqrt.pop %v16
    %v31 = vmul.f32 %v16, %v30
    %vm32 = vcmp.eq.f32.partialorder %v16, inf
    %v33 = vsel %vm32, %v16, %v31
    %vm34 = vcmp.eq.f32.partialorder %v16, 0.0
    %v35 = vand.u32 %v16, 2147483648
    %v36 = vsel %vm34, %v35, %v33
    %v37 = vrsqrt.pop %v17
    %v38 = vmul.f32 %v17, %v37
    %vm39 = vcmp.eq.f32.partialorder %v17, inf
    %v40 = vsel %vm39, %v17, %v38
    %vm41 = vcmp.eq.f32.partialorder %v17, 0.0
    %v42 = vand.u32 %v17, 2147483648
    %v43 = vsel %vm41, %v42, %v40
    %v44 = vrsqrt.pop %v18
    %v45 = vmul.f32 %v18, %v44
    %vm46 = vcmp.eq.f32.partialorder %v18, inf
    %v47 = vsel %vm46, %v18, %v45
    %vm48 = vcmp.eq.f32.partialorder %v18, 0.0
    %v49 = vand.u32 %v18, 2147483648
    %v50 = vsel %vm48, %v49, %v47
    %v51 = vrsqrt.pop %v19
    %v52 = vmul.f32 %v19, %v51
    %vm53 = vcmp.eq.f32.partialorder %v19, inf
    %v54 = vsel %vm53, %v19, %v52
    %vm55 = vcmp.eq.f32.partialorder %v19, 0.0
    %v56 = vand.u32 %v19, 2147483648
    %v57 = vsel %vm55, %v56, %v54
    %v58 = vrsqrt.pop %v20
    %v59 = vmul.f32 %v20, %v58
    %vm60 = vcmp.eq.f32.partialorder %v20, inf
    %v61 = vsel %vm60, %v20, %v59
    %vm62 = vcmp.eq.f32.partialorder %v20, 0.0
    %v63 = vand.u32 %v20, 2147483648
    %v64 = vsel %vm62, %v63, %v61
    %v65 = vrsqrt.pop %v21
    %v66 = vmul.f32 %v21, %v65
    %vm67 = vcmp.eq.f32.partialorder %v21, inf
    %v68 = vsel %vm67, %v21, %v66
    %vm69 = vcmp.eq.f32.partialorder %v21, 0.0
    %v70 = vand.u32 %v21, 2147483648
    %v71 = vsel %vm69, %v70, %v68
    %v72 = vrsqrt.pop %v22
    %v73 = vmul.f32 %v22, %v72
    %vm74 = vcmp.eq.f32.partialorder %v22, inf
    %v75 = vsel %vm74, %v22, %v73
    %vm76 = vcmp.eq.f32.partialorder %v22, 0.0
    %v77 = vand.u32 %v22, 2147483648
    %v78 = vsel %vm76, %v77, %v75
    %v79 = vsub.f32 1.0, %v15
    %v80 = vsub.f32 1.0, %v16
    %v81 = vsub.f32 1.0, %v17
    %v82 = vsub.f32 1.0, %v18
    %v83 = vsub.f32 1.0, %v19
    %v84 = vsub.f32 1.0, %v20
    %v85 = vsub.f32 1.0, %v21
    %v86 = vsub.f32 1.0, %v22
    %v87 = vrsqrt.pop %v79
    %v88 = vmul.f32 %v79, %v87
    %vm89 = vcmp.eq.f32.partialorder %v79, inf
    %v90 = vsel %vm89, %v79, %v88
    %vm91 = vcmp.eq.f32.partialorder %v79, 0.0
    %v92 = vand.u32 %v79, 2147483648
    %v93 = vsel %vm91, %v92, %v90
    %v94 = vrsqrt.pop %v80
    %v95 = vmul.f32 %v80, %v94
    %vm96 = vcmp.eq.f32.partialorder %v80, inf
    %v97 = vsel %vm96, %v80, %v95
    %vm98 = vcmp.eq.f32.partialorder %v80, 0.0
    %v99 = vand.u32 %v80, 2147483648
    %v100 = vsel %vm98, %v99, %v97
    %v101 = vrsqrt.pop %v81
    %v102 = vmul.f32 %v81, %v101
    %vm103 = vcmp.eq.f32.partialorder %v81, inf
    %v104 = vsel %vm103, %v81, %v102
    %vm105 = vcmp.eq.f32.partialorder %v81, 0.0
    %v106 = vand.u32 %v81, 2147483648
    %v107 = vsel %vm105, %v106, %v104
    %v108 = vrsqrt.pop %v82
    %v109 = vmul.f32 %v82, %v108
    %vm110 = vcmp.eq.f32.partialorder %v82, inf
    %v111 = vsel %vm110, %v82, %v109
    %vm112 = vcmp.eq.f32.partialorder %v82, 0.0
    %v113 = vand.u32 %v82, 2147483648
    %v114 = vsel %vm112, %v113, %v111
    %v115 = vrsqrt.pop %v83
    %v116 = vmul.f32 %v83, %v115
    %vm117 = vcmp.eq.f32.partialorder %v83, inf
    %v118 = vsel %vm117, %v83, %v116
    %vm119 = vcmp.eq.f32.partialorder %v83, 0.0
    %v120 = vand.u32 %v83, 2147483648
    %v121 = vsel %vm119, %v120, %v118
    %v122 = vrsqrt.pop %v84
    %v123 = vmul.f32 %v84, %v122
    %vm124 = vcmp.eq.f32.partialorder %v84, inf
    %v125 = vsel %vm124, %v84, %v123
    %vm126 = vcmp.eq.f32.partialorder %v84, 0.0
    %v127 = vand.u32 %v84, 2147483648
    %v128 = vsel %vm126, %v127, %v125
    %v129 = vrsqrt.pop %v85
    %v130 = vmul.f32 %v85, %v129
    %vm131 = vcmp.eq.f32.partialorder %v85, inf
    %v132 = vsel %vm131, %v85, %v130
    %vm133 = vcmp.eq.f32.partialorder %v85, 0.0
    %v134 = vand.u32 %v85, 2147483648
    %v135 = vsel %vm133, %v134, %v132
    %v136 = vrsqrt.pop %v86
    %v137 = vmul.f32 %v86, %v136
    %vm138 = vcmp.eq.f32.partialorder %v86, inf
    %v139 = vsel %vm138, %v86, %v137
    %vm140 = vcmp.eq.f32.partialorder %v86, 0.0
    %v141 = vand.u32 %v86, 2147483648
    %v142 = vsel %vm140, %v141, %v139
    %v143 = vlaneseq
    %v144 = vand.u32 %v143, 127
    %vm145 = vcmp.lt.s32.totalorder %v144, 2
    %147 = vset.pattern.permute.xlu0 6
    %148 = vperm.xlu0 %147, %v29
    %v149 = vpop.permute.xlu0 %148
    %152 = vset.pattern.permute.xlu0 6
    %153 = vperm.xlu0 %152, %v36
    %v154 = vpop.permute.xlu0 %153
    %157 = vset.pattern.permute.xlu0 6
    %158 = vperm.xlu0 %157, %v43
    %v159 = vpop.permute.xlu0 %158
    %162 = vset.pattern.permute.xlu0 6
    %163 = vperm.xlu0 %162, %v50
    %v164 = vpop.permute.xlu0 %163
    %167 = vset.pattern.permute.xlu0 6
    %168 = vperm.xlu0 %167, %v57
    %v169 = vpop.permute.xlu0 %168
    %172 = vset.pattern.permute.xlu0 6
    %173 = vperm.xlu0 %172, %v64
    %v174 = vpop.permute.xlu0 %173
    %177 = vset.pattern.permute.xlu0 6
    %178 = vperm.xlu0 %177, %v71
    %v179 = vpop.permute.xlu0 %178
    %182 = vset.pattern.permute.xlu0 6
    %183 = vperm.xlu0 %182, %v78
    %v184 = vpop.permute.xlu0 %183
    %v186 = vsel %vm145, %v149, 1.0
    %v187 = vsel %vm145, %v154, 1.0
    %v188 = vsel %vm145, %v159, 1.0
    %v189 = vsel %vm145, %v164, 1.0
    %v190 = vsel %vm145, %v169, 1.0
    %v191 = vsel %vm145, %v174, 1.0
    %v192 = vsel %vm145, %v179, 1.0
    %v193 = vsel %vm145, %v184, 1.0
    %195 = vset.pattern.permute.xlu0 6
    %196 = vperm.xlu0 %195, %v93
    %v197 = vpop.permute.xlu0 %196
    %200 = vset.pattern.permute.xlu0 6
    %201 = vperm.xlu0 %200, %v100
    %v202 = vpop.permute.xlu0 %201
    %205 = vset.pattern.permute.xlu0 6
    %206 = vperm.xlu0 %205, %v107
    %v207 = vpop.permute.xlu0 %206
    %210 = vset.pattern.permute.xlu0 6
    %211 = vperm.xlu0 %210, %v114
    %v212 = vpop.permute.xlu0 %211
    %215 = vset.pattern.permute.xlu0 6
    %216 = vperm.xlu0 %215, %v121
    %v217 = vpop.permute.xlu0 %216
    %220 = vset.pattern.permute.xlu0 6
    %221 = vperm.xlu0 %220, %v128
    %v222 = vpop.permute.xlu0 %221
    %225 = vset.pattern.permute.xlu0 6
    %226 = vperm.xlu0 %225, %v135
    %v227 = vpop.permute.xlu0 %226
    %230 = vset.pattern.permute.xlu0 6
    %231 = vperm.xlu0 %230, %v142
    %v232 = vpop.permute.xlu0 %231
    %v234 = vsel %vm145, %v197, 0.0
    %v235 = vsel %vm145, %v202, 0.0
    %v236 = vsel %vm145, %v207, 0.0
    %v237 = vsel %vm145, %v212, 0.0
    %v238 = vsel %vm145, %v217, 0.0
    %v239 = vsel %vm145, %v222, 0.0
    %v240 = vsel %vm145, %v227, 0.0
    %v241 = vsel %vm145, %v232, 0.0
    %v242 = vmul.f32 %v186, %v15
    %v243 = vmul.f32 %v187, %v16
    %v244 = vmul.f32 %v188, %v17
    %v245 = vmul.f32 %v189, %v18
    %v246 = vmul.f32 %v190, %v19
    %v247 = vmul.f32 %v191, %v20
    %v248 = vmul.f32 %v192, %v21
    %v249 = vmul.f32 %v193, %v22
    %258 = vrot.lane.b32.xlu0 %v15, 124
    %v259 = vpop.permute.xlu0 %258
    %260 = vrot.lane.b32.xlu0 %v16, 124
    %v261 = vpop.permute.xlu0 %260
    %262 = vrot.lane.b32.xlu0 %v17, 124
    %v263 = vpop.permute.xlu0 %262
    %264 = vrot.lane.b32.xlu0 %v18, 124
    %v265 = vpop.permute.xlu0 %264
    %266 = vrot.lane.b32.xlu0 %v19, 124
    %v267 = vpop.permute.xlu0 %266
    %268 = vrot.lane.b32.xlu0 %v20, 124
    %v269 = vpop.permute.xlu0 %268
    %270 = vrot.lane.b32.xlu0 %v21, 124
    %v271 = vpop.permute.xlu0 %270
    %272 = vrot.lane.b32.xlu0 %v22, 124
    %v273 = vpop.permute.xlu0 %272
    %v282 = vmul.f32 %v234, %v259
    %v283 = vmul.f32 %v235, %v261
    %v284 = vmul.f32 %v236, %v263
    %v285 = vmul.f32 %v237, %v265
    %v286 = vmul.f32 %v238, %v267
    %v287 = vmul.f32 %v239, %v269
    %v288 = vmul.f32 %v240, %v271
    %v289 = vmul.f32 %v241, %v273
    %v290 = vadd.f32 %v242, %v282
    %v291 = vadd.f32 %v243, %v283
    %v292 = vadd.f32 %v244, %v284
    %v293 = vadd.f32 %v245, %v285
    %v294 = vadd.f32 %v246, %v286
    %v295 = vadd.f32 %v247, %v287
    %v296 = vadd.f32 %v248, %v288
    %v297 = vadd.f32 %v249, %v289
    %v298 = vld [vmem:[%s1] sm:$0xff]
    %v299 = vld [vmem:[%s1 + $0x8] sm:$0xff]
    %v300 = vld [vmem:[%s1 + $0x10] sm:$0xff]
    %v301 = vld [vmem:[%s1 + $0x18] sm:$0xff]
    %v302 = vld [vmem:[%s1 + $0x20] sm:$0xff]
    %v303 = vld [vmem:[%s1 + $0x28] sm:$0x1]
    %v304 = vld [vmem:[%s1 + $0x29] sm:$0x1]
    %v305 = vlaneseq
    %v306 = vshrl.u32 %v305, 7
    %v307 = vsub.s32 0, %v306
    %v308 = vrot.slane %v303, %v307
    %vm309 = vcmask 64512
    %v310 = vsel %vm309, %v15, 0
    %v312 = vsel %vm309, %v16, 0
    %v314 = vsel %vm309, %v17, 0
    %v316 = vsel %vm309, %v18, 0
    %v318 = vsel %vm309, %v19, 0
    %v320 = vsel %vm309, %v20, 0
    %v322 = vsel %vm309, %v21, 0
    %v324 = vsel %vm309, %v22, 0
    %326 = vmatprep.subr.mxu0 0.0
    %327 = vmatpush1.msra.mxu0 %v298
    %328 = vmatprep.subr.mxu0 0.0
    %329 = vmatpush1.msra.mxu0 0.0
    %330 = vmatprep.subr.mxu0 0.0
    %331 = vmatpush1.msra.mxu0 0.0
    %332 = vmatprep.subr.mxu0 0.0
    %333 = vmatpush1.msra.mxu0 0.0
    %334 = vmatprep.subr.mxu0 0.0
    %335 = vmatpush1.msra.mxu0 0.0
    %336 = vmatprep.subr.mxu0 0.0
    %337 = vmatpush1.msra.mxu0 0.0
    %338 = vmatprep.subr.mxu0 0.0
    %339 = vmatpush1.msra.mxu0 0.0
    %340 = vmatprep.subr.mxu0 0.0
    %341 = vmatpush1.msra.mxu0 0.0
    %342 = vmatprep.subr.mxu0 0.0
    %343 = vmatpush1.msra.mxu0 0.0
    %344 = vmatprep.subr.mxu0 0.0
    %345 = vmatpush1.msra.mxu0 0.0
    %346 = vmatprep.subr.mxu0 0.0
    %347 = vmatpush1.msra.mxu0 0.0
    %348 = vmatprep.subr.mxu0 0.0
    %349 = vmatpush1.msra.mxu0 0.0
    %350 = vmatprep.subr.mxu0 0.0
    %351 = vmatpush1.msra.mxu0 0.0
    %352 = vmatprep.subr.mxu0 0.0
    %353 = vmatpush1.msra.mxu0 0.0
    %354 = vmatprep.subr.mxu0 0.0
    %355 = vmatpush1.msra.mxu0 0.0
    %356 = vmatprep.subr.mxu0 0.0
    %357 = vmatpush1.msra.mxu0 0.0
    %358 = vmatprep.subr.mxu0 0.0
    %359 = vmatpush1.msra.mxu0 0.0
    %360 = vmatprep.subr.mxu0 0.0
    %361 = vmatpush1.msra.mxu0 0.0
    %362 = vmatprep.subr.mxu0 0.0
    %363 = vmatpush1.msra.mxu0 0.0
    %364 = vmatprep.subr.mxu0 0.0
    %365 = vmatpush1.msra.mxu0 0.0
    %366 = vmatprep.subr.mxu0 0.0
    %367 = vmatpush1.msra.mxu0 0.0
    %368 = vmatprep.subr.mxu0 0.0
    %369 = vmatpush1.msra.mxu0 0.0
    %370 = vmatprep.subr.mxu0 0.0
    %371 = vmatpush1.msra.mxu0 0.0
    %372 = vmatprep.subr.mxu0 0.0
    %373 = vmatpush1.msra.mxu0 0.0
    %374 = vmatprep.subr.mxu0 0.0
    %375 = vmatpush1.msra.mxu0 0.0
    %376 = vmatprep.subr.mxu0 0.0
    %377 = vmatpush1.msra.mxu0 0.0
    %378 = vmatprep.subr.mxu0 0.0
    %379 = vmatpush1.msra.mxu0 0.0
    %380 = vmatprep.subr.mxu0 0.0
    %381 = vmatpush1.msra.mxu0 0.0
    %382 = vmatprep.subr.mxu0 0.0
    %383 = vmatpush1.msra.mxu0 0.0
    %384 = vmatprep.subr.mxu0 0.0
    %385 = vmatpush1.msra.mxu0 0.0
    %386 = vmatprep.subr.mxu0 0.0
    %387 = vmatpush1.msra.mxu0 0.0
    %388 = vmatprep.subr.mxu0 0.0
    %389 = vmatpush1.msra.mxu0 0.0
    %390 = vmatprep.mubr.f32.mxu0 0.0
    %391 = vmatmul.mubr.f32.gmra.mrb[0].mxu0 %v310
    %v392 = vpop.f32.mrb[0].mxu0
    %v393 = vadd.f32 %v308, %v392
    %v394 = vpop.f32.mrb[0].mxu0
    %395 = vmatprep.mubr.f32.mxu0 0.0
    %396 = vmatmul.mubr.f32.gmra.mrb[0].mxu0 %v312
    %v397 = vpop.f32.mrb[0].mxu0
    %v398 = vadd.f32 %v308, %v397
    %v399 = vpop.f32.mrb[0].mxu0
    %400 = vmatprep.mubr.f32.mxu0 0.0
    %401 = vmatmul.mubr.f32.gmra.mrb[0].mxu0 %v314
    %v402 = vpop.f32.mrb[0].mxu0
    %v403 = vadd.f32 %v308, %v402
    %v404 = vpop.f32.mrb[0].mxu0
    %405 = vmatprep.mubr.f32.mxu0 0.0
    %406 = vmatmul.mubr.f32.gmra.mrb[0].mxu0 %v316
    %v407 = vpop.f32.mrb[0].mxu0
    %v408 = vadd.f32 %v308, %v407
    %v409 = vpop.f32.mrb[0].mxu0
    %410 = vmatprep.mubr.f32.mxu0 0.0
    %411 = vmatmul.mubr.f32.gmra.mrb[0].mxu0 %v318
    %v412 = vpop.f32.mrb[0].mxu0
    %v413 = vadd.f32 %v308, %v412
    %v414 = vpop.f32.mrb[0].mxu0
    %415 = vmatprep.mubr.f32.mxu0 0.0
    %416 = vmatmul.mubr.f32.gmra.mrb[0].mxu0 %v320
    %v417 = vpop.f32.mrb[0].mxu0
    %v418 = vadd.f32 %v308, %v417
    %v419 = vpop.f32.mrb[0].mxu0
    %420 = vmatprep.mubr.f32.mxu0 0.0
    %421 = vmatmul.mubr.f32.gmra.mrb[0].mxu0 %v322
    %v422 = vpop.f32.mrb[0].mxu0
    %v423 = vadd.f32 %v308, %v422
    %v424 = vpop.f32.mrb[0].mxu0
    %425 = vmatprep.mubr.f32.mxu0 0.0
    %426 = vmatmul.mubr.f32.gmra.mrb[0].mxu0 %v324
    %v427 = vpop.f32.mrb[0].mxu0
    %v428 = vadd.f32 %v308, %v427
    %v429 = vpop.f32.mrb[0].mxu0
    %430 = vdwg.mxu0
    %v431 = vlaneseq
    %v432 = vshrl.u32 %v431, 7
    %v433 = vsub.s32 0, %v432
    %v434 = vrot.slane %v304, %v433
    %vm435 = vcmask 261120
    %v437 = vsel %vm435, 0.0, 0
    %439 = vmatprep.subr.mxu0 0.0
    %440 = vmatpush1.msra.mxu0 %v299
    %441 = vmatprep.subr.mxu0 0.0
    %442 = vmatpush1.msra.mxu0 %v300
    %443 = vmatprep.subr.mxu0 0.0
    %444 = vmatpush1.msra.mxu0 %v301
    %445 = vmatprep.subr.mxu0 0.0
    %446 = vmatpush1.msra.mxu0 %v302
    %447 = vmatprep.subr.mxu0 0.0
    %448 = vmatpush1.msra.mxu0 0.0
    %449 = vmatprep.subr.mxu0 0.0
    %450 = vmatpush1.msra.mxu0 0.0
    %451 = vmatprep.subr.mxu0 0.0
    %452 = vmatpush1.msra.mxu0 0.0
    %453 = vmatprep.subr.mxu0 0.0
    %454 = vmatpush1.msra.mxu0 0.0
    %455 = vmatprep.subr.mxu0 0.0
    %456 = vmatpush1.msra.mxu0 0.0
    %457 = vmatprep.subr.mxu0 0.0
    %458 = vmatpush1.msra.mxu0 0.0
    %459 = vmatprep.subr.mxu0 0.0
    %460 = vmatpush1.msra.mxu0 0.0
    %461 = vmatprep.subr.mxu0 0.0
    %462 = vmatpush1.msra.mxu0 0.0
    %463 = vmatprep.subr.mxu0 0.0
    %464 = vmatpush1.msra.mxu0 0.0
    %465 = vmatprep.subr.mxu0 0.0
    %466 = vmatpush1.msra.mxu0 0.0
    %467 = vmatprep.subr.mxu0 0.0
    %468 = vmatpush1.msra.mxu0 0.0
    %469 = vmatprep.subr.mxu0 0.0
    %470 = vmatpush1.msra.mxu0 0.0
    %471 = vmatprep.subr.mxu0 0.0
    %472 = vmatpush1.msra.mxu0 0.0
    %473 = vmatprep.subr.mxu0 0.0
    %474 = vmatpush1.msra.mxu0 0.0
    %475 = vmatprep.subr.mxu0 0.0
    %476 = vmatpush1.msra.mxu0 0.0
    %477 = vmatprep.subr.mxu0 0.0
    %478 = vmatpush1.msra.mxu0 0.0
    %479 = vmatprep.subr.mxu0 0.0
    %480 = vmatpush1.msra.mxu0 0.0
    %481 = vmatprep.subr.mxu0 0.0
    %482 = vmatpush1.msra.mxu0 0.0
    %483 = vmatprep.subr.mxu0 0.0
    %484 = vmatpush1.msra.mxu0 0.0
    %485 = vmatprep.subr.mxu0 0.0
    %486 = vmatpush1.msra.mxu0 0.0
    %487 = vmatprep.subr.mxu0 0.0
    %488 = vmatpush1.msra.mxu0 0.0
    %489 = vmatprep.subr.mxu0 0.0
    %490 = vmatpush1.msra.mxu0 0.0
    %491 = vmatprep.subr.mxu0 0.0
    %492 = vmatpush1.msra.mxu0 0.0
    %493 = vmatprep.subr.mxu0 0.0
    %494 = vmatpush1.msra.mxu0 0.0
    %495 = vmatprep.subr.mxu0 0.0
    %496 = vmatpush1.msra.mxu0 0.0
    %497 = vmatprep.subr.mxu0 0.0
    %498 = vmatpush1.msra.mxu0 0.0
    %499 = vmatprep.subr.mxu0 0.0
    %500 = vmatpush1.msra.mxu0 0.0
    %501 = vmatprep.subr.mxu0 0.0
    %502 = vmatpush1.msra.mxu0 0.0
    %503 = vmatprep.mubr.f32.mxu0 0.0
    %504 = vmatmul.mubr.f32.gmra.mrb[0].mxu0 %v437
    %v505 = vpop.f32.mrb[0].mxu0
    %v506 = vadd.f32 %v434, %v505
    %v507 = vpop.f32.mrb[0].mxu0
    %508 = vdwg.mxu0
    %v509 = vadd.f32 %v393, %v506
    %v510 = vxor.u32 %v509, 2147483648
    %v511 = vmul.f32 %v510, 1.442695
    %v512 = vpow.pop %v511
    %v513 = vadd.f32 %v512, 1.0
    %v514 = vrcp.pop %v513
    %v515 = vmul.f32 1.0, %v514
    %517 = vrot.lane.b32.xlu0 %v506, 64
    %v518 = vpop.permute.xlu0 %517
    %v520 = vmul.f32 %v515, %v518
    %522 = vrot.lane.b32.xlu0 %v520, 64
    %v523 = vpop.permute.xlu0 %522
    %v525 = vadd.f32 %v393, %v523
    %v526 = vtanh.pop %v525
    %v527 = vsub.f32 1.0, %v515
    %529 = vrot.lane.b32.xlu0 %v526, 96
    %v530 = vpop.permute.xlu0 %529
    %v532 = vmul.f32 %v527, %v530
    %v533 = vmul.f32 %v515, 0.0
    %v534 = vadd.f32 %v532, %v533
    %536 = vrot.lane.b32.xlu0 %v534, 96
    %v537 = vpop.permute.xlu0 %536
    %v538 = vsel %vm435, %v537, 0
    %540 = vmatprep.subr.mxu0 0.0
    %541 = vmatpush1.msra.mxu0 %v299
    %542 = vmatprep.subr.mxu0 0.0
    %543 = vmatpush1.msra.mxu0 %v300
    %544 = vmatprep.subr.mxu0 0.0
    %545 = vmatpush1.msra.mxu0 %v301
    %546 = vmatprep.subr.mxu0 0.0
    %547 = vmatpush1.msra.mxu0 %v302
    %548 = vmatprep.subr.mxu0 0.0
    %549 = vmatpush1.msra.mxu0 0.0
    %550 = vmatprep.subr.mxu0 0.0
    %551 = vmatpush1.msra.mxu0 0.0
    %552 = vmatprep.subr.mxu0 0.0
    %553 = vmatpush1.msra.mxu0 0.0
    %554 = vmatprep.subr.mxu0 0.0
    %555 = vmatpush1.msra.mxu0 0.0
    %556 = vmatprep.subr.mxu0 0.0
    %557 = vmatpush1.msra.mxu0 0.0
    %558 = vmatprep.subr.mxu0 0.0
    %559 = vmatpush1.msra.mxu0 0.0
    %560 = vmatprep.subr.mxu0 0.0
    %561 = vmatpush1.msra.mxu0 0.0
    %562 = vmatprep.subr.mxu0 0.0
    %563 = vmatpush1.msra.mxu0 0.0
    %564 = vmatprep.subr.mxu0 0.0
    %565 = vmatpush1.msra.mxu0 0.0
    %566 = vmatprep.subr.mxu0 0.0
    %567 = vmatpush1.msra.mxu0 0.0
    %568 = vmatprep.subr.mxu0 0.0
    %569 = vmatpush1.msra.mxu0 0.0
    %570 = vmatprep.subr.mxu0 0.0
    %571 = vmatpush1.msra.mxu0 0.0
    %572 = vmatprep.subr.mxu0 0.0
    %573 = vmatpush1.msra.mxu0 0.0
    %574 = vmatprep.subr.mxu0 0.0
    %575 = vmatpush1.msra.mxu0 0.0
    %576 = vmatprep.subr.mxu0 0.0
    %577 = vmatpush1.msra.mxu0 0.0
    %578 = vmatprep.subr.mxu0 0.0
    %579 = vmatpush1.msra.mxu0 0.0
    %580 = vmatprep.subr.mxu0 0.0
    %581 = vmatpush1.msra.mxu0 0.0
    %582 = vmatprep.subr.mxu0 0.0
    %583 = vmatpush1.msra.mxu0 0.0
    %584 = vmatprep.subr.mxu0 0.0
    %585 = vmatpush1.msra.mxu0 0.0
    %586 = vmatprep.subr.mxu0 0.0
    %587 = vmatpush1.msra.mxu0 0.0
    %588 = vmatprep.subr.mxu0 0.0
    %589 = vmatpush1.msra.mxu0 0.0
    %590 = vmatprep.subr.mxu0 0.0
    %591 = vmatpush1.msra.mxu0 0.0
    %592 = vmatprep.subr.mxu0 0.0
    %593 = vmatpush1.msra.mxu0 0.0
    %594 = vmatprep.subr.mxu0 0.0
    %595 = vmatpush1.msra.mxu0 0.0
    %596 = vmatprep.subr.mxu0 0.0
    %597 = vmatpush1.msra.mxu0 0.0
    %598 = vmatprep.subr.mxu0 0.0
    %599 = vmatpush1.msra.mxu0 0.0
    %600 = vmatprep.subr.mxu0 0.0
    %601 = vmatpush1.msra.mxu0 0.0
    %602 = vmatprep.subr.mxu0 0.0
    %603 = vmatpush1.msra.mxu0 0.0
    %604 = vmatprep.mubr.f32.mxu0 0.0
    %605 = vmatmul.mubr.f32.gmra.mrb[0].mxu0 %v538
    %v606 = vpop.f32.mrb[0].mxu0
    %v607 = vadd.f32 %v434, %v606
    %v608 = vpop.f32.mrb[0].mxu0
    %609 = vdwg.mxu0
    %v610 = vadd.f32 %v398, %v607
    %v611 = vxor.u32 %v610, 2147483648
    %v612 = vmul.f32 %v611, 1.442695
    %v613 = vpow.pop %v612
    %v614 = vadd.f32 %v613, 1.0
    %v615 = vrcp.pop %v614
    %v616 = vmul.f32 1.0, %v615
    %618 = vrot.lane.b32.xlu0 %v607, 64
    %v619 = vpop.permute.xlu0 %618
    %v621 = vmul.f32 %v616, %v619
    %623 = vrot.lane.b32.xlu0 %v621, 64
    %v624 = vpop.permute.xlu0 %623
    %v626 = vadd.f32 %v398, %v624
    %v627 = vtanh.pop %v626
    %v628 = vsub.f32 1.0, %v616
    %630 = vrot.lane.b32.xlu0 %v627, 96
    %v631 = vpop.permute.xlu0 %630
    %v633 = vmul.f32 %v628, %v631
    %v634 = vmul.f32 %v616, %v534
    %v635 = vadd.f32 %v633, %v634
    %637 = vrot.lane.b32.xlu0 %v635, 96
    %v638 = vpop.permute.xlu0 %637
    %v639 = vsel %vm435, %v638, 0
    %641 = vmatprep.subr.mxu0 0.0
    %642 = vmatpush1.msra.mxu0 %v299
    %643 = vmatprep.subr.mxu0 0.0
    %644 = vmatpush1.msra.mxu0 %v300
    %645 = vmatprep.subr.mxu0 0.0
    %646 = vmatpush1.msra.mxu0 %v301
    %647 = vmatprep.subr.mxu0 0.0
    %648 = vmatpush1.msra.mxu0 %v302
    %649 = vmatprep.subr.mxu0 0.0
    %650 = vmatpush1.msra.mxu0 0.0
    %651 = vmatprep.subr.mxu0 0.0
    %652 = vmatpush1.msra.mxu0 0.0
    %653 = vmatprep.subr.mxu0 0.0
    %654 = vmatpush1.msra.mxu0 0.0
    %655 = vmatprep.subr.mxu0 0.0
    %656 = vmatpush1.msra.mxu0 0.0
    %657 = vmatprep.subr.mxu0 0.0
    %658 = vmatpush1.msra.mxu0 0.0
    %659 = vmatprep.subr.mxu0 0.0
    %660 = vmatpush1.msra.mxu0 0.0
    %661 = vmatprep.subr.mxu0 0.0
    %662 = vmatpush1.msra.mxu0 0.0
    %663 = vmatprep.subr.mxu0 0.0
    %664 = vmatpush1.msra.mxu0 0.0
    %665 = vmatprep.subr.mxu0 0.0
    %666 = vmatpush1.msra.mxu0 0.0
    %667 = vmatprep.subr.mxu0 0.0
    %668 = vmatpush1.msra.mxu0 0.0
    %669 = vmatprep.subr.mxu0 0.0
    %670 = vmatpush1.msra.mxu0 0.0
    %671 = vmatprep.subr.mxu0 0.0
    %672 = vmatpush1.msra.mxu0 0.0
    %673 = vmatprep.subr.mxu0 0.0
    %674 = vmatpush1.msra.mxu0 0.0
    %675 = vmatprep.subr.mxu0 0.0
    %676 = vmatpush1.msra.mxu0 0.0
    %677 = vmatprep.subr.mxu0 0.0
    %678 = vmatpush1.msra.mxu0 0.0
    %679 = vmatprep.subr.mxu0 0.0
    %680 = vmatpush1.msra.mxu0 0.0
    %681 = vmatprep.subr.mxu0 0.0
    %682 = vmatpush1.msra.mxu0 0.0
    %683 = vmatprep.subr.mxu0 0.0
    %684 = vmatpush1.msra.mxu0 0.0
    %685 = vmatprep.subr.mxu0 0.0
    %686 = vmatpush1.msra.mxu0 0.0
    %687 = vmatprep.subr.mxu0 0.0
    %688 = vmatpush1.msra.mxu0 0.0
    %689 = vmatprep.subr.mxu0 0.0
    %690 = vmatpush1.msra.mxu0 0.0
    %691 = vmatprep.subr.mxu0 0.0
    %692 = vmatpush1.msra.mxu0 0.0
    %693 = vmatprep.subr.mxu0 0.0
    %694 = vmatpush1.msra.mxu0 0.0
    %695 = vmatprep.subr.mxu0 0.0
    %696 = vmatpush1.msra.mxu0 0.0
    %697 = vmatprep.subr.mxu0 0.0
    %698 = vmatpush1.msra.mxu0 0.0
    %699 = vmatprep.subr.mxu0 0.0
    %700 = vmatpush1.msra.mxu0 0.0
    %701 = vmatprep.subr.mxu0 0.0
    %702 = vmatpush1.msra.mxu0 0.0
    %703 = vmatprep.subr.mxu0 0.0
    %704 = vmatpush1.msra.mxu0 0.0
    %705 = vmatprep.mubr.f32.mxu0 0.0
    %706 = vmatmul.mubr.f32.gmra.mrb[0].mxu0 %v639
    %v707 = vpop.f32.mrb[0].mxu0
    %v708 = vadd.f32 %v434, %v707
    %v709 = vpop.f32.mrb[0].mxu0
    %710 = vdwg.mxu0
    %v711 = vadd.f32 %v403, %v708
    %v712 = vxor.u32 %v711, 2147483648
    %v713 = vmul.f32 %v712, 1.442695
    %v714 = vpow.pop %v713
    %v715 = vadd.f32 %v714, 1.0
    %v716 = vrcp.pop %v715
    %v717 = vmul.f32 1.0, %v716
    %719 = vrot.lane.b32.xlu0 %v708, 64
    %v720 = vpop.permute.xlu0 %719
    %v722 = vmul.f32 %v717, %v720
    %724 = vrot.lane.b32.xlu0 %v722, 64
    %v725 = vpop.permute.xlu0 %724
    %v727 = vadd.f32 %v403, %v725
    %v728 = vtanh.pop %v727
    %v729 = vsub.f32 1.0, %v717
    %731 = vrot.lane.b32.xlu0 %v728, 96
    %v732 = vpop.permute.xlu0 %731
    %v734 = vmul.f32 %v729, %v732
    %v735 = vmul.f32 %v717, %v635
    %v736 = vadd.f32 %v734, %v735
    %738 = vrot.lane.b32.xlu0 %v736, 96
    %v739 = vpop.permute.xlu0 %738
    %v740 = vsel %vm435, %v739, 0
    %742 = vmatprep.subr.mxu0 0.0
    %743 = vmatpush1.msra.mxu0 %v299
    %744 = vmatprep.subr.mxu0 0.0
    %745 = vmatpush1.msra.mxu0 %v300
    %746 = vmatprep.subr.mxu0 0.0
    %747 = vmatpush1.msra.mxu0 %v301
    %748 = vmatprep.subr.mxu0 0.0
    %749 = vmatpush1.msra.mxu0 %v302
    %750 = vmatprep.subr.mxu0 0.0
    %751 = vmatpush1.msra.mxu0 0.0
    %752 = vmatprep.subr.mxu0 0.0
    %753 = vmatpush1.msra.mxu0 0.0
    %754 = vmatprep.subr.mxu0 0.0
    %755 = vmatpush1.msra.mxu0 0.0
    %756 = vmatprep.subr.mxu0 0.0
    %757 = vmatpush1.msra.mxu0 0.0
    %758 = vmatprep.subr.mxu0 0.0
    %759 = vmatpush1.msra.mxu0 0.0
    %760 = vmatprep.subr.mxu0 0.0
    %761 = vmatpush1.msra.mxu0 0.0
    %762 = vmatprep.subr.mxu0 0.0
    %763 = vmatpush1.msra.mxu0 0.0
    %764 = vmatprep.subr.mxu0 0.0
    %765 = vmatpush1.msra.mxu0 0.0
    %766 = vmatprep.subr.mxu0 0.0
    %767 = vmatpush1.msra.mxu0 0.0
    %768 = vmatprep.subr.mxu0 0.0
    %769 = vmatpush1.msra.mxu0 0.0
    %770 = vmatprep.subr.mxu0 0.0
    %771 = vmatpush1.msra.mxu0 0.0
    %772 = vmatprep.subr.mxu0 0.0
    %773 = vmatpush1.msra.mxu0 0.0
    %774 = vmatprep.subr.mxu0 0.0
    %775 = vmatpush1.msra.mxu0 0.0
    %776 = vmatprep.subr.mxu0 0.0
    %777 = vmatpush1.msra.mxu0 0.0
    %778 = vmatprep.subr.mxu0 0.0
    %779 = vmatpush1.msra.mxu0 0.0
    %780 = vmatprep.subr.mxu0 0.0
    %781 = vmatpush1.msra.mxu0 0.0
    %782 = vmatprep.subr.mxu0 0.0
    %783 = vmatpush1.msra.mxu0 0.0
    %784 = vmatprep.subr.mxu0 0.0
    %785 = vmatpush1.msra.mxu0 0.0
    %786 = vmatprep.subr.mxu0 0.0
    %787 = vmatpush1.msra.mxu0 0.0
    %788 = vmatprep.subr.mxu0 0.0
    %789 = vmatpush1.msra.mxu0 0.0
    %790 = vmatprep.subr.mxu0 0.0
    %791 = vmatpush1.msra.mxu0 0.0
    %792 = vmatprep.subr.mxu0 0.0
    %793 = vmatpush1.msra.mxu0 0.0
    %794 = vmatprep.subr.mxu0 0.0
    %795 = vmatpush1.msra.mxu0 0.0
    %796 = vmatprep.subr.mxu0 0.0
    %797 = vmatpush1.msra.mxu0 0.0
    %798 = vmatprep.subr.mxu0 0.0
    %799 = vmatpush1.msra.mxu0 0.0
    %800 = vmatprep.subr.mxu0 0.0
    %801 = vmatpush1.msra.mxu0 0.0
    %802 = vmatprep.subr.mxu0 0.0
    %803 = vmatpush1.msra.mxu0 0.0
    %804 = vmatprep.subr.mxu0 0.0
    %805 = vmatpush1.msra.mxu0 0.0
    %806 = vmatprep.mubr.f32.mxu0 0.0
    %807 = vmatmul.mubr.f32.gmra.mrb[0].mxu0 %v740
    %v808 = vpop.f32.mrb[0].mxu0
    %v809 = vadd.f32 %v434, %v808
    %v810 = vpop.f32.mrb[0].mxu0
    %811 = vdwg.mxu0
    %v812 = vadd.f32 %v408, %v809
    %v813 = vxor.u32 %v812, 2147483648
    %v814 = vmul.f32 %v813, 1.442695
    %v815 = vpow.pop %v814
    %v816 = vadd.f32 %v815, 1.0
    %v817 = vrcp.pop %v816
    %v818 = vmul.f32 1.0, %v817
    %820 = vrot.lane.b32.xlu0 %v809, 64
    %v821 = vpop.permute.xlu0 %820
    %v823 = vmul.f32 %v818, %v821
    %825 = vrot.lane.b32.xlu0 %v823, 64
    %v826 = vpop.permute.xlu0 %825
    %v828 = vadd.f32 %v408, %v826
    %v829 = vtanh.pop %v828
    %v830 = vsub.f32 1.0, %v818
    %832 = vrot.lane.b32.xlu0 %v829, 96
    %v833 = vpop.permute.xlu0 %832
    %v835 = vmul.f32 %v830, %v833
    %v836 = vmul.f32 %v818, %v736
    %v837 = vadd.f32 %v835, %v836
    %839 = vrot.lane.b32.xlu0 %v837, 96
    %v840 = vpop.permute.xlu0 %839
    %v841 = vsel %vm435, %v840, 0
    %843 = vmatprep.subr.mxu0 0.0
    %844 = vmatpush1.msra.mxu0 %v299
    %845 = vmatprep.subr.mxu0 0.0
    %846 = vmatpush1.msra.mxu0 %v300
    %847 = vmatprep.subr.mxu0 0.0
    %848 = vmatpush1.msra.mxu0 %v301
    %849 = vmatprep.subr.mxu0 0.0
    %850 = vmatpush1.msra.mxu0 %v302
    %851 = vmatprep.subr.mxu0 0.0
    %852 = vmatpush1.msra.mxu0 0.0
    %853 = vmatprep.subr.mxu0 0.0
    %854 = vmatpush1.msra.mxu0 0.0
    %855 = vmatprep.subr.mxu0 0.0
    %856 = vmatpush1.msra.mxu0 0.0
    %857 = vmatprep.subr.mxu0 0.0
    %858 = vmatpush1.msra.mxu0 0.0
    %859 = vmatprep.subr.mxu0 0.0
    %860 = vmatpush1.msra.mxu0 0.0
    %861 = vmatprep.subr.mxu0 0.0
    %862 = vmatpush1.msra.mxu0 0.0
    %863 = vmatprep.subr.mxu0 0.0
    %864 = vmatpush1.msra.mxu0 0.0
    %865 = vmatprep.subr.mxu0 0.0
    %866 = vmatpush1.msra.mxu0 0.0
    %867 = vmatprep.subr.mxu0 0.0
    %868 = vmatpush1.msra.mxu0 0.0
    %869 = vmatprep.subr.mxu0 0.0
    %870 = vmatpush1.msra.mxu0 0.0
    %871 = vmatprep.subr.mxu0 0.0
    %872 = vmatpush1.msra.mxu0 0.0
    %873 = vmatprep.subr.mxu0 0.0
    %874 = vmatpush1.msra.mxu0 0.0
    %875 = vmatprep.subr.mxu0 0.0
    %876 = vmatpush1.msra.mxu0 0.0
    %877 = vmatprep.subr.mxu0 0.0
    %878 = vmatpush1.msra.mxu0 0.0
    %879 = vmatprep.subr.mxu0 0.0
    %880 = vmatpush1.msra.mxu0 0.0
    %881 = vmatprep.subr.mxu0 0.0
    %882 = vmatpush1.msra.mxu0 0.0
    %883 = vmatprep.subr.mxu0 0.0
    %884 = vmatpush1.msra.mxu0 0.0
    %885 = vmatprep.subr.mxu0 0.0
    %886 = vmatpush1.msra.mxu0 0.0
    %887 = vmatprep.subr.mxu0 0.0
    %888 = vmatpush1.msra.mxu0 0.0
    %889 = vmatprep.subr.mxu0 0.0
    %890 = vmatpush1.msra.mxu0 0.0
    %891 = vmatprep.subr.mxu0 0.0
    %892 = vmatpush1.msra.mxu0 0.0
    %893 = vmatprep.subr.mxu0 0.0
    %894 = vmatpush1.msra.mxu0 0.0
    %895 = vmatprep.subr.mxu0 0.0
    %896 = vmatpush1.msra.mxu0 0.0
    %897 = vmatprep.subr.mxu0 0.0
    %898 = vmatpush1.msra.mxu0 0.0
    %899 = vmatprep.subr.mxu0 0.0
    %900 = vmatpush1.msra.mxu0 0.0
    %901 = vmatprep.subr.mxu0 0.0
    %902 = vmatpush1.msra.mxu0 0.0
    %903 = vmatprep.subr.mxu0 0.0
    %904 = vmatpush1.msra.mxu0 0.0
    %905 = vmatprep.subr.mxu0 0.0
    %906 = vmatpush1.msra.mxu0 0.0
    %907 = vmatprep.mubr.f32.mxu0 0.0
    %908 = vmatmul.mubr.f32.gmra.mrb[0].mxu0 %v841
    %v909 = vpop.f32.mrb[0].mxu0
    %v910 = vadd.f32 %v434, %v909
    %v911 = vpop.f32.mrb[0].mxu0
    %912 = vdwg.mxu0
    %v913 = vadd.f32 %v413, %v910
    %v914 = vxor.u32 %v913, 2147483648
    %v915 = vmul.f32 %v914, 1.442695
    %v916 = vpow.pop %v915
    %v917 = vadd.f32 %v916, 1.0
    %v918 = vrcp.pop %v917
    %v919 = vmul.f32 1.0, %v918
    %921 = vrot.lane.b32.xlu0 %v910, 64
    %v922 = vpop.permute.xlu0 %921
    %v924 = vmul.f32 %v919, %v922
    %926 = vrot.lane.b32.xlu0 %v924, 64
    %v927 = vpop.permute.xlu0 %926
    %v929 = vadd.f32 %v413, %v927
    %v930 = vtanh.pop %v929
    %v931 = vsub.f32 1.0, %v919
    %933 = vrot.lane.b32.xlu0 %v930, 96
    %v934 = vpop.permute.xlu0 %933
    %v936 = vmul.f32 %v931, %v934
    %v937 = vmul.f32 %v919, %v837
    %v938 = vadd.f32 %v936, %v937
    %940 = vrot.lane.b32.xlu0 %v938, 96
    %v941 = vpop.permute.xlu0 %940
    %v942 = vsel %vm435, %v941, 0
    %944 = vmatprep.subr.mxu0 0.0
    %945 = vmatpush1.msra.mxu0 %v299
    %946 = vmatprep.subr.mxu0 0.0
    %947 = vmatpush1.msra.mxu0 %v300
    %948 = vmatprep.subr.mxu0 0.0
    %949 = vmatpush1.msra.mxu0 %v301
    %950 = vmatprep.subr.mxu0 0.0
    %951 = vmatpush1.msra.mxu0 %v302
    %952 = vmatprep.subr.mxu0 0.0
    %953 = vmatpush1.msra.mxu0 0.0
    %954 = vmatprep.subr.mxu0 0.0
    %955 = vmatpush1.msra.mxu0 0.0
    %956 = vmatprep.subr.mxu0 0.0
    %957 = vmatpush1.msra.mxu0 0.0
    %958 = vmatprep.subr.mxu0 0.0
    %959 = vmatpush1.msra.mxu0 0.0
    %960 = vmatprep.subr.mxu0 0.0
    %961 = vmatpush1.msra.mxu0 0.0
    %962 = vmatprep.subr.mxu0 0.0
    %963 = vmatpush1.msra.mxu0 0.0
    %964 = vmatprep.subr.mxu0 0.0
    %965 = vmatpush1.msra.mxu0 0.0
    %966 = vmatprep.subr.mxu0 0.0
    %967 = vmatpush1.msra.mxu0 0.0
    %968 = vmatprep.subr.mxu0 0.0
    %969 = vmatpush1.msra.mxu0 0.0
    %970 = vmatprep.subr.mxu0 0.0
    %971 = vmatpush1.msra.mxu0 0.0
    %972 = vmatprep.subr.mxu0 0.0
    %973 = vmatpush1.msra.mxu0 0.0
    %974 = vmatprep.subr.mxu0 0.0
    %975 = vmatpush1.msra.mxu0 0.0
    %976 = vmatprep.subr.mxu0 0.0
    %977 = vmatpush1.msra.mxu0 0.0
    %978 = vmatprep.subr.mxu0 0.0
    %979 = vmatpush1.msra.mxu0 0.0
    %980 = vmatprep.subr.mxu0 0.0
    %981 = vmatpush1.msra.mxu0 0.0
    %982 = vmatprep.subr.mxu0 0.0
    %983 = vmatpush1.msra.mxu0 0.0
    %984 = vmatprep.subr.mxu0 0.0
    %985 = vmatpush1.msra.mxu0 0.0
    %986 = vmatprep.subr.mxu0 0.0
    %987 = vmatpush1.msra.mxu0 0.0
    %988 = vmatprep.subr.mxu0 0.0
    %989 = vmatpush1.msra.mxu0 0.0
    %990 = vmatprep.subr.mxu0 0.0
    %991 = vmatpush1.msra.mxu0 0.0
    %992 = vmatprep.subr.mxu0 0.0
    %993 = vmatpush1.msra.mxu0 0.0
    %994 = vmatprep.subr.mxu0 0.0
    %995 = vmatpush1.msra.mxu0 0.0
    %996 = vmatprep.subr.mxu0 0.0
    %997 = vmatpush1.msra.mxu0 0.0
    %998 = vmatprep.subr.mxu0 0.0
    %999 = vmatpush1.msra.mxu0 0.0
    %1000 = vmatprep.subr.mxu0 0.0
    %1001 = vmatpush1.msra.mxu0 0.0
    %1002 = vmatprep.subr.mxu0 0.0
    %1003 = vmatpush1.msra.mxu0 0.0
    %1004 = vmatprep.subr.mxu0 0.0
    %1005 = vmatpush1.msra.mxu0 0.0
    %1006 = vmatprep.subr.mxu0 0.0
    %1007 = vmatpush1.msra.mxu0 0.0
    %1008 = vmatprep.mubr.f32.mxu0 0.0
    %1009 = vmatmul.mubr.f32.gmra.mrb[0].mxu0 %v942
    %v1010 = vpop.f32.mrb[0].mxu0
    %v1011 = vadd.f32 %v434, %v1010
    %v1012 = vpop.f32.mrb[0].mxu0
    %1013 = vdwg.mxu0
    %v1014 = vadd.f32 %v418, %v1011
    %v1015 = vxor.u32 %v1014, 2147483648
    %v1016 = vmul.f32 %v1015, 1.442695
    %v1017 = vpow.pop %v1016
    %v1018 = vadd.f32 %v1017, 1.0
    %v1019 = vrcp.pop %v1018
    %v1020 = vmul.f32 1.0, %v1019
    %1022 = vrot.lane.b32.xlu0 %v1011, 64
    %v1023 = vpop.permute.xlu0 %1022
    %v1025 = vmul.f32 %v1020, %v1023
    %1027 = vrot.lane.b32.xlu0 %v1025, 64
    %v1028 = vpop.permute.xlu0 %1027
    %v1030 = vadd.f32 %v418, %v1028
    %v1031 = vtanh.pop %v1030
    %v1032 = vsub.f32 1.0, %v1020
    %1034 = vrot.lane.b32.xlu0 %v1031, 96
    %v1035 = vpop.permute.xlu0 %1034
    %v1037 = vmul.f32 %v1032, %v1035
    %v1038 = vmul.f32 %v1020, %v938
    %v1039 = vadd.f32 %v1037, %v1038
    %1041 = vrot.lane.b32.xlu0 %v1039, 96
    %v1042 = vpop.permute.xlu0 %1041
    %v1043 = vsel %vm435, %v1042, 0
    %1045 = vmatprep.subr.mxu0 0.0
    %1046 = vmatpush1.msra.mxu0 %v299
    %1047 = vmatprep.subr.mxu0 0.0
    %1048 = vmatpush1.msra.mxu0 %v300
    %1049 = vmatprep.subr.mxu0 0.0
    %1050 = vmatpush1.msra.mxu0 %v301
    %1051 = vmatprep.subr.mxu0 0.0
    %1052 = vmatpush1.msra.mxu0 %v302
    %1053 = vmatprep.subr.mxu0 0.0
    %1054 = vmatpush1.msra.mxu0 0.0
    %1055 = vmatprep.subr.mxu0 0.0
    %1056 = vmatpush1.msra.mxu0 0.0
    %1057 = vmatprep.subr.mxu0 0.0
    %1058 = vmatpush1.msra.mxu0 0.0
    %1059 = vmatprep.subr.mxu0 0.0
    %1060 = vmatpush1.msra.mxu0 0.0
    %1061 = vmatprep.subr.mxu0 0.0
    %1062 = vmatpush1.msra.mxu0 0.0
    %1063 = vmatprep.subr.mxu0 0.0
    %1064 = vmatpush1.msra.mxu0 0.0
    %1065 = vmatprep.subr.mxu0 0.0
    %1066 = vmatpush1.msra.mxu0 0.0
    %1067 = vmatprep.subr.mxu0 0.0
    %1068 = vmatpush1.msra.mxu0 0.0
    %1069 = vmatprep.subr.mxu0 0.0
    %1070 = vmatpush1.msra.mxu0 0.0
    %1071 = vmatprep.subr.mxu0 0.0
    %1072 = vmatpush1.msra.mxu0 0.0
    %1073 = vmatprep.subr.mxu0 0.0
    %1074 = vmatpush1.msra.mxu0 0.0
    %1075 = vmatprep.subr.mxu0 0.0
    %1076 = vmatpush1.msra.mxu0 0.0
    %1077 = vmatprep.subr.mxu0 0.0
    %1078 = vmatpush1.msra.mxu0 0.0
    %1079 = vmatprep.subr.mxu0 0.0
    %1080 = vmatpush1.msra.mxu0 0.0
    %1081 = vmatprep.subr.mxu0 0.0
    %1082 = vmatpush1.msra.mxu0 0.0
    %1083 = vmatprep.subr.mxu0 0.0
    %1084 = vmatpush1.msra.mxu0 0.0
    %1085 = vmatprep.subr.mxu0 0.0
    %1086 = vmatpush1.msra.mxu0 0.0
    %1087 = vmatprep.subr.mxu0 0.0
    %1088 = vmatpush1.msra.mxu0 0.0
    %1089 = vmatprep.subr.mxu0 0.0
    %1090 = vmatpush1.msra.mxu0 0.0
    %1091 = vmatprep.subr.mxu0 0.0
    %1092 = vmatpush1.msra.mxu0 0.0
    %1093 = vmatprep.subr.mxu0 0.0
    %1094 = vmatpush1.msra.mxu0 0.0
    %1095 = vmatprep.subr.mxu0 0.0
    %1096 = vmatpush1.msra.mxu0 0.0
    %1097 = vmatprep.subr.mxu0 0.0
    %1098 = vmatpush1.msra.mxu0 0.0
    %1099 = vmatprep.subr.mxu0 0.0
    %1100 = vmatpush1.msra.mxu0 0.0
    %1101 = vmatprep.subr.mxu0 0.0
    %1102 = vmatpush1.msra.mxu0 0.0
    %1103 = vmatprep.subr.mxu0 0.0
    %1104 = vmatpush1.msra.mxu0 0.0
    %1105 = vmatprep.subr.mxu0 0.0
    %1106 = vmatpush1.msra.mxu0 0.0
    %1107 = vmatprep.subr.mxu0 0.0
    %1108 = vmatpush1.msra.mxu0 0.0
    %1109 = vmatprep.mubr.f32.mxu0 0.0
    %1110 = vmatmul.mubr.f32.gmra.mrb[0].mxu0 %v1043
    %v1111 = vpop.f32.mrb[0].mxu0
    %v1112 = vadd.f32 %v434, %v1111
    %v1113 = vpop.f32.mrb[0].mxu0
    %1114 = vdwg.mxu0
    %v1115 = vadd.f32 %v423, %v1112
    %v1116 = vxor.u32 %v1115, 2147483648
    %v1117 = vmul.f32 %v1116, 1.442695
    %v1118 = vpow.pop %v1117
    %v1119 = vadd.f32 %v1118, 1.0
    %v1120 = vrcp.pop %v1119
    %v1121 = vmul.f32 1.0, %v1120
    %1123 = vrot.lane.b32.xlu0 %v1112, 64
    %v1124 = vpop.permute.xlu0 %1123
    %v1126 = vmul.f32 %v1121, %v1124
    %1128 = vrot.lane.b32.xlu0 %v1126, 64
    %v1129 = vpop.permute.xlu0 %1128
    %v1131 = vadd.f32 %v423, %v1129
    %v1132 = vtanh.pop %v1131
    %v1133 = vsub.f32 1.0, %v1121
    %1135 = vrot.lane.b32.xlu0 %v1132, 96
    %v1136 = vpop.permute.xlu0 %1135
    %v1138 = vmul.f32 %v1133, %v1136
    %v1139 = vmul.f32 %v1121, %v1039
    %v1140 = vadd.f32 %v1138, %v1139
    %1142 = vrot.lane.b32.xlu0 %v1140, 96
    %v1143 = vpop.permute.xlu0 %1142
    %v1144 = vsel %vm435, %v1143, 0
    %1146 = vmatprep.subr.mxu0 0.0
    %1147 = vmatpush1.msra.mxu0 %v299
    %1148 = vmatprep.subr.mxu0 0.0
    %1149 = vmatpush1.msra.mxu0 %v300
    %1150 = vmatprep.subr.mxu0 0.0
    %1151 = vmatpush1.msra.mxu0 %v301
    %1152 = vmatprep.subr.mxu0 0.0
    %1153 = vmatpush1.msra.mxu0 %v302
    %1154 = vmatprep.subr.mxu0 0.0
    %1155 = vmatpush1.msra.mxu0 0.0
    %1156 = vmatprep.subr.mxu0 0.0
    %1157 = vmatpush1.msra.mxu0 0.0
    %1158 = vmatprep.subr.mxu0 0.0
    %1159 = vmatpush1.msra.mxu0 0.0
    %1160 = vmatprep.subr.mxu0 0.0
    %1161 = vmatpush1.msra.mxu0 0.0
    %1162 = vmatprep.subr.mxu0 0.0
    %1163 = vmatpush1.msra.mxu0 0.0
    %1164 = vmatprep.subr.mxu0 0.0
    %1165 = vmatpush1.msra.mxu0 0.0
    %1166 = vmatprep.subr.mxu0 0.0
    %1167 = vmatpush1.msra.mxu0 0.0
    %1168 = vmatprep.subr.mxu0 0.0
    %1169 = vmatpush1.msra.mxu0 0.0
    %1170 = vmatprep.subr.mxu0 0.0
    %1171 = vmatpush1.msra.mxu0 0.0
    %1172 = vmatprep.subr.mxu0 0.0
    %1173 = vmatpush1.msra.mxu0 0.0
    %1174 = vmatprep.subr.mxu0 0.0
    %1175 = vmatpush1.msra.mxu0 0.0
    %1176 = vmatprep.subr.mxu0 0.0
    %1177 = vmatpush1.msra.mxu0 0.0
    %1178 = vmatprep.subr.mxu0 0.0
    %1179 = vmatpush1.msra.mxu0 0.0
    %1180 = vmatprep.subr.mxu0 0.0
    %1181 = vmatpush1.msra.mxu0 0.0
    %1182 = vmatprep.subr.mxu0 0.0
    %1183 = vmatpush1.msra.mxu0 0.0
    %1184 = vmatprep.subr.mxu0 0.0
    %1185 = vmatpush1.msra.mxu0 0.0
    %1186 = vmatprep.subr.mxu0 0.0
    %1187 = vmatpush1.msra.mxu0 0.0
    %1188 = vmatprep.subr.mxu0 0.0
    %1189 = vmatpush1.msra.mxu0 0.0
    %1190 = vmatprep.subr.mxu0 0.0
    %1191 = vmatpush1.msra.mxu0 0.0
    %1192 = vmatprep.subr.mxu0 0.0
    %1193 = vmatpush1.msra.mxu0 0.0
    %1194 = vmatprep.subr.mxu0 0.0
    %1195 = vmatpush1.msra.mxu0 0.0
    %1196 = vmatprep.subr.mxu0 0.0
    %1197 = vmatpush1.msra.mxu0 0.0
    %1198 = vmatprep.subr.mxu0 0.0
    %1199 = vmatpush1.msra.mxu0 0.0
    %1200 = vmatprep.subr.mxu0 0.0
    %1201 = vmatpush1.msra.mxu0 0.0
    %1202 = vmatprep.subr.mxu0 0.0
    %1203 = vmatpush1.msra.mxu0 0.0
    %1204 = vmatprep.subr.mxu0 0.0
    %1205 = vmatpush1.msra.mxu0 0.0
    %1206 = vmatprep.subr.mxu0 0.0
    %1207 = vmatpush1.msra.mxu0 0.0
    %1208 = vmatprep.subr.mxu0 0.0
    %1209 = vmatpush1.msra.mxu0 0.0
    %1210 = vmatprep.mubr.f32.mxu0 0.0
    %1211 = vmatmul.mubr.f32.gmra.mrb[0].mxu0 %v1144
    %v1212 = vpop.f32.mrb[0].mxu0
    %v1213 = vadd.f32 %v434, %v1212
    %v1214 = vpop.f32.mrb[0].mxu0
    %1215 = vdwg.mxu0
    %v1216 = vadd.f32 %v428, %v1213
    %v1217 = vxor.u32 %v1216, 2147483648
    %v1218 = vmul.f32 %v1217, 1.442695
    %v1219 = vpow.pop %v1218
    %v1220 = vadd.f32 %v1219, 1.0
    %v1221 = vrcp.pop %v1220
    %v1222 = vmul.f32 1.0, %v1221
    %1224 = vrot.lane.b32.xlu0 %v1213, 64
    %v1225 = vpop.permute.xlu0 %1224
    %v1227 = vmul.f32 %v1222, %v1225
    %1229 = vrot.lane.b32.xlu0 %v1227, 64
    %v1230 = vpop.permute.xlu0 %1229
    %v1232 = vadd.f32 %v428, %v1230
    %v1233 = vtanh.pop %v1232
    %v1234 = vsub.f32 1.0, %v1222
    %1236 = vrot.lane.b32.xlu0 %v1233, 96
    %v1237 = vpop.permute.xlu0 %1236
    %v1239 = vmul.f32 %v1234, %v1237
    %v1240 = vmul.f32 %v1222, %v1140
    %v1241 = vadd.f32 %v1239, %v1240
    %v1242 = vld [vmem:[%s2] sm:$0xf]
    %v1243 = vld [vmem:[%s2 + $0x4] sm:$0x1]
    %v1244 = vlaneseq
    %v1245 = vshrl.u32 %v1244, 7
    %v1246 = vsub.s32 0, %v1245
    %v1247 = vrot.slane %v1243, %v1246
    %vm1248 = vcmask 31744
    %v1250 = vsel %vm1248, %v290, 0
    %v1253 = vsel %vm1248, %v291, 0
    %v1256 = vsel %vm1248, %v292, 0
    %v1259 = vsel %vm1248, %v293, 0
    %v1262 = vsel %vm1248, %v294, 0
    %v1265 = vsel %vm1248, %v295, 0
    %v1268 = vsel %vm1248, %v296, 0
    %v1271 = vsel %vm1248, %v297, 0
    %vm1273 = vcmask 1043456
    %v1275 = vsel %vm1273, %v1242, 0
    %1277 = vmatprep.subr.mxu0 0.0
    %1278 = vmatpush1.msra.mxu0 %v1275
    %1279 = vmatprep.subr.mxu0 0.0
    %1280 = vmatpush1.msra.mxu0 0.0
    %1281 = vmatprep.subr.mxu0 0.0
    %1282 = vmatpush1.msra.mxu0 0.0
    %1283 = vmatprep.subr.mxu0 0.0
    %1284 = vmatpush1.msra.mxu0 0.0
    %1285 = vmatprep.subr.mxu0 0.0
    %1286 = vmatpush1.msra.mxu0 0.0
    %1287 = vmatprep.subr.mxu0 0.0
    %1288 = vmatpush1.msra.mxu0 0.0
    %1289 = vmatprep.subr.mxu0 0.0
    %1290 = vmatpush1.msra.mxu0 0.0
    %1291 = vmatprep.subr.mxu0 0.0
    %1292 = vmatpush1.msra.mxu0 0.0
    %1293 = vmatprep.subr.mxu0 0.0
    %1294 = vmatpush1.msra.mxu0 0.0
    %1295 = vmatprep.subr.mxu0 0.0
    %1296 = vmatpush1.msra.mxu0 0.0
    %1297 = vmatprep.subr.mxu0 0.0
    %1298 = vmatpush1.msra.mxu0 0.0
    %1299 = vmatprep.subr.mxu0 0.0
    %1300 = vmatpush1.msra.mxu0 0.0
    %1301 = vmatprep.subr.mxu0 0.0
    %1302 = vmatpush1.msra.mxu0 0.0
    %1303 = vmatprep.subr.mxu0 0.0
    %1304 = vmatpush1.msra.mxu0 0.0
    %1305 = vmatprep.subr.mxu0 0.0
    %1306 = vmatpush1.msra.mxu0 0.0
    %1307 = vmatprep.subr.mxu0 0.0
    %1308 = vmatpush1.msra.mxu0 0.0
    %1309 = vmatprep.subr.mxu0 0.0
    %1310 = vmatpush1.msra.mxu0 0.0
    %1311 = vmatprep.subr.mxu0 0.0
    %1312 = vmatpush1.msra.mxu0 0.0
    %1313 = vmatprep.subr.mxu0 0.0
    %1314 = vmatpush1.msra.mxu0 0.0
    %1315 = vmatprep.subr.mxu0 0.0
    %1316 = vmatpush1.msra.mxu0 0.0
    %1317 = vmatprep.subr.mxu0 0.0
    %1318 = vmatpush1.msra.mxu0 0.0
    %1319 = vmatprep.subr.mxu0 0.0
    %1320 = vmatpush1.msra.mxu0 0.0
    %1321 = vmatprep.subr.mxu0 0.0
    %1322 = vmatpush1.msra.mxu0 0.0
    %1323 = vmatprep.subr.mxu0 0.0
    %1324 = vmatpush1.msra.mxu0 0.0
    %1325 = vmatprep.subr.mxu0 0.0
    %1326 = vmatpush1.msra.mxu0 0.0
    %1327 = vmatprep.subr.mxu0 0.0
    %1328 = vmatpush1.msra.mxu0 0.0
    %1329 = vmatprep.subr.mxu0 0.0
    %1330 = vmatpush1.msra.mxu0 0.0
    %1331 = vmatprep.subr.mxu0 0.0
    %1332 = vmatpush1.msra.mxu0 0.0
    %1333 = vmatprep.subr.mxu0 0.0
    %1334 = vmatpush1.msra.mxu0 0.0
    %1335 = vmatprep.subr.mxu0 0.0
    %1336 = vmatpush1.msra.mxu0 0.0
    %1337 = vmatprep.subr.mxu0 0.0
    %1338 = vmatpush1.msra.mxu0 0.0
    %1339 = vmatprep.subr.mxu0 0.0
    %1340 = vmatpush1.msra.mxu0 0.0
    %1341 = vmatprep.mubr.f32.mxu0 0.0
    %1342 = vmatmul.mubr.f32.gmra.mrb[0].mxu0 %v1250
    %v1343 = vpop.f32.mrb[0].mxu0
    %v1344 = vadd.f32 %v1247, %v1343
    %v1345 = vpop.f32.mrb[0].mxu0
    %1346 = vmatprep.mubr.f32.mxu0 0.0
    %1347 = vmatmul.mubr.f32.gmra.mrb[0].mxu0 %v1253
    %v1348 = vpop.f32.mrb[0].mxu0
    %v1349 = vadd.f32 %v1247, %v1348
    %v1350 = vpop.f32.mrb[0].mxu0
    %1351 = vmatprep.mubr.f32.mxu0 0.0
    %1352 = vmatmul.mubr.f32.gmra.mrb[0].mxu0 %v1256
    %v1353 = vpop.f32.mrb[0].mxu0
    %v1354 = vadd.f32 %v1247, %v1353
    %v1355 = vpop.f32.mrb[0].mxu0
    %1356 = vmatprep.mubr.f32.mxu0 0.0
    %1357 = vmatmul.mubr.f32.gmra.mrb[0].mxu0 %v1259
    %v1358 = vpop.f32.mrb[0].mxu0
    %v1359 = vadd.f32 %v1247, %v1358
    %v1360 = vpop.f32.mrb[0].mxu0
    %1361 = vmatprep.mubr.f32.mxu0 0.0
    %1362 = vmatmul.mubr.f32.gmra.mrb[0].mxu0 %v1262
    %v1363 = vpop.f32.mrb[0].mxu0
    %v1364 = vadd.f32 %v1247, %v1363
    %v1365 = vpop.f32.mrb[0].mxu0
    %1366 = vmatprep.mubr.f32.mxu0 0.0
    %1367 = vmatmul.mubr.f32.gmra.mrb[0].mxu0 %v1265
    %v1368 = vpop.f32.mrb[0].mxu0
    %v1369 = vadd.f32 %v1247, %v1368
    %v1370 = vpop.f32.mrb[0].mxu0
    %1371 = vmatprep.mubr.f32.mxu0 0.0
    %1372 = vmatmul.mubr.f32.gmra.mrb[0].mxu0 %v1268
    %v1373 = vpop.f32.mrb[0].mxu0
    %v1374 = vadd.f32 %v1247, %v1373
    %v1375 = vpop.f32.mrb[0].mxu0
    %1376 = vmatprep.mubr.f32.mxu0 0.0
    %1377 = vmatmul.mubr.f32.gmra.mrb[0].mxu0 %v1271
    %v1378 = vpop.f32.mrb[0].mxu0
    %v1379 = vadd.f32 %v1247, %v1378
    %v1380 = vpop.f32.mrb[0].mxu0
    %1381 = vdwg.mxu0
    %v1382 = vmax.f32 %v1344, 0.0
    %v1383 = vmax.f32 %v1349, 0.0
    %v1384 = vmax.f32 %v1354, 0.0
    %v1385 = vmax.f32 %v1359, 0.0
    %v1386 = vmax.f32 %v1364, 0.0
    %v1387 = vmax.f32 %v1369, 0.0
    %v1388 = vmax.f32 %v1374, 0.0
    %v1389 = vmax.f32 %v1379, 0.0
    %v1390 = vld [vmem:[%s2 + $0x8] sm:$0xff]
    %v1391 = vld [vmem:[%s2 + $0x10] sm:$0xff]
    %v1392 = vld [vmem:[%s2 + $0x18] sm:$0xff]
    %v1393 = vld [vmem:[%s2 + $0x20] sm:$0xff]
    %v1394 = vld [vmem:[%s2 + $0x28] sm:$0xff]
    %v1395 = vld [vmem:[%s2 + $0x30] sm:$0xff]
    %v1396 = vld [vmem:[%s2 + $0x38] sm:$0xff]
    %v1397 = vld [vmem:[%s2 + $0x40] sm:$0xff]
    %v1398 = vld [vmem:[%s2 + $0x48] sm:$0x1]
    %v1399 = vsel %vm435, %v1382, %v534
    %v1400 = vsel %vm435, %v1383, %v635
    %v1401 = vsel %vm435, %v1384, %v736
    %v1402 = vsel %vm435, %v1385, %v837
    %v1403 = vsel %vm435, %v1386, %v938
    %v1404 = vsel %vm435, %v1387, %v1039
    %v1405 = vsel %vm435, %v1388, %v1140
    %v1406 = vsel %vm435, %v1389, %v1241
    %v1407 = vlaneseq
    %v1408 = vshrl.u32 %v1407, 7
    %v1409 = vsub.s32 0, %v1408
    %v1410 = vrot.slane %v1398, %v1409
    %vm1411 = vcmask 523264
    %v1413 = vsel %vm1411, %v1399, 0
    %v1416 = vsel %vm1411, %v1400, 0
    %v1419 = vsel %vm1411, %v1401, 0
    %v1422 = vsel %vm1411, %v1402, 0
    %v1425 = vsel %vm1411, %v1403, 0
    %v1428 = vsel %vm1411, %v1404, 0
    %v1431 = vsel %vm1411, %v1405, 0
    %v1434 = vsel %vm1411, %v1406, 0
    %1436 = vmatprep.subr.mxu0 0.0
    %1437 = vmatpush1.msra.mxu0 %v1390
    %1438 = vmatprep.subr.mxu0 0.0
    %1439 = vmatpush1.msra.mxu0 %v1391
    %1440 = vmatprep.subr.mxu0 0.0
    %1441 = vmatpush1.msra.mxu0 %v1392
    %1442 = vmatprep.subr.mxu0 0.0
    %1443 = vmatpush1.msra.mxu0 %v1393
    %1444 = vmatprep.subr.mxu0 0.0
    %1445 = vmatpush1.msra.mxu0 %v1394
    %1446 = vmatprep.subr.mxu0 0.0
    %1447 = vmatpush1.msra.mxu0 %v1395
    %1448 = vmatprep.subr.mxu0 0.0
    %1449 = vmatpush1.msra.mxu0 %v1396
    %1450 = vmatprep.subr.mxu0 0.0
    %1451 = vmatpush1.msra.mxu0 %v1397
    %1452 = vmatprep.subr.mxu0 0.0
    %1453 = vmatpush1.msra.mxu0 0.0
    %1454 = vmatprep.subr.mxu0 0.0
    %1455 = vmatpush1.msra.mxu0 0.0
    %1456 = vmatprep.subr.mxu0 0.0
    %1457 = vmatpush1.msra.mxu0 0.0
    %1458 = vmatprep.subr.mxu0 0.0
    %1459 = vmatpush1.msra.mxu0 0.0
    %1460 = vmatprep.subr.mxu0 0.0
    %1461 = vmatpush1.msra.mxu0 0.0
    %1462 = vmatprep.subr.mxu0 0.0
    %1463 = vmatpush1.msra.mxu0 0.0
    %1464 = vmatprep.subr.mxu0 0.0
    %1465 = vmatpush1.msra.mxu0 0.0
    %1466 = vmatprep.subr.mxu0 0.0
    %1467 = vmatpush1.msra.mxu0 0.0
    %1468 = vmatprep.subr.mxu0 0.0
    %1469 = vmatpush1.msra.mxu0 0.0
    %1470 = vmatprep.subr.mxu0 0.0
    %1471 = vmatpush1.msra.mxu0 0.0
    %1472 = vmatprep.subr.mxu0 0.0
    %1473 = vmatpush1.msra.mxu0 0.0
    %1474 = vmatprep.subr.mxu0 0.0
    %1475 = vmatpush1.msra.mxu0 0.0
    %1476 = vmatprep.subr.mxu0 0.0
    %1477 = vmatpush1.msra.mxu0 0.0
    %1478 = vmatprep.subr.mxu0 0.0
    %1479 = vmatpush1.msra.mxu0 0.0
    %1480 = vmatprep.subr.mxu0 0.0
    %1481 = vmatpush1.msra.mxu0 0.0
    %1482 = vmatprep.subr.mxu0 0.0
    %1483 = vmatpush1.msra.mxu0 0.0
    %1484 = vmatprep.subr.mxu0 0.0
    %1485 = vmatpush1.msra.mxu0 0.0
    %1486 = vmatprep.subr.mxu0 0.0
    %1487 = vmatpush1.msra.mxu0 0.0
    %1488 = vmatprep.subr.mxu0 0.0
    %1489 = vmatpush1.msra.mxu0 0.0
    %1490 = vmatprep.subr.mxu0 0.0
    %1491 = vmatpush1.msra.mxu0 0.0
    %1492 = vmatprep.subr.mxu0 0.0
    %1493 = vmatpush1.msra.mxu0 0.0
    %1494 = vmatprep.subr.mxu0 0.0
    %1495 = vmatpush1.msra.mxu0 0.0
    %1496 = vmatprep.subr.mxu0 0.0
    %1497 = vmatpush1.msra.mxu0 0.0
    %1498 = vmatprep.subr.mxu0 0.0
    %1499 = vmatpush1.msra.mxu0 0.0
    %1500 = vmatprep.mubr.f32.mxu0 0.0
    %1501 = vmatmul.mubr.f32.gmra.mrb[0].mxu0 %v1413
    %v1502 = vpop.f32.mrb[0].mxu0
    %v1503 = vadd.f32 %v1410, %v1502
    %v1504 = vpop.f32.mrb[0].mxu0
    %1505 = vmatprep.mubr.f32.mxu0 0.0
    %1506 = vmatmul.mubr.f32.gmra.mrb[0].mxu0 %v1416
    %v1507 = vpop.f32.mrb[0].mxu0
    %v1508 = vadd.f32 %v1410, %v1507
    %v1509 = vpop.f32.mrb[0].mxu0
    %1510 = vmatprep.mubr.f32.mxu0 0.0
    %1511 = vmatmul.mubr.f32.gmra.mrb[0].mxu0 %v1419
    %v1512 = vpop.f32.mrb[0].mxu0
    %v1513 = vadd.f32 %v1410, %v1512
    %v1514 = vpop.f32.mrb[0].mxu0
    %1515 = vmatprep.mubr.f32.mxu0 0.0
    %1516 = vmatmul.mubr.f32.gmra.mrb[0].mxu0 %v1422
    %v1517 = vpop.f32.mrb[0].mxu0
    %v1518 = vadd.f32 %v1410, %v1517
    %v1519 = vpop.f32.mrb[0].mxu0
    %1520 = vmatprep.mubr.f32.mxu0 0.0
    %1521 = vmatmul.mubr.f32.gmra.mrb[0].mxu0 %v1425
    %v1522 = vpop.f32.mrb[0].mxu0
    %v1523 = vadd.f32 %v1410, %v1522
    %v1524 = vpop.f32.mrb[0].mxu0
    %1525 = vmatprep.mubr.f32.mxu0 0.0
    %1526 = vmatmul.mubr.f32.gmra.mrb[0].mxu0 %v1428
    %v1527 = vpop.f32.mrb[0].mxu0
    %v1528 = vadd.f32 %v1410, %v1527
    %v1529 = vpop.f32.mrb[0].mxu0
    %1530 = vmatprep.mubr.f32.mxu0 0.0
    %1531 = vmatmul.mubr.f32.gmra.mrb[0].mxu0 %v1431
    %v1532 = vpop.f32.mrb[0].mxu0
    %v1533 = vadd.f32 %v1410, %v1532
    %v1534 = vpop.f32.mrb[0].mxu0
    %1535 = vmatprep.mubr.f32.mxu0 0.0
    %1536 = vmatmul.mubr.f32.gmra.mrb[0].mxu0 %v1434
    %v1537 = vpop.f32.mrb[0].mxu0
    %v1538 = vadd.f32 %v1410, %v1537
    %v1539 = vpop.f32.mrb[0].mxu0
    %1540 = vdwg.mxu0
    %v1541 = vlaneseq
    %v1542 = vshrl.u32 %v1541, 7
    %v1543 = vadd.s32 %v1542, 8
    %v1544 = vadd.s32 %v1542, 16
    %v1545 = vadd.s32 %v1542, 24
    %v1546 = vadd.s32 %v1542, 32
    %v1547 = vadd.s32 %v1542, 40
    %v1548 = vadd.s32 %v1542, 48
    %v1549 = vadd.s32 %v1542, 56
    %v1550 = vand.u32 %v1542, 7
    %v1551 = vand.u32 %v1543, 7
    %v1552 = vand.u32 %v1544, 7
    %v1553 = vand.u32 %v1545, 7
    %v1554 = vand.u32 %v1546, 7
    %v1555 = vand.u32 %v1547, 7
    %v1556 = vand.u32 %v1548, 7
    %v1557 = vand.u32 %v1549, 7
    %vm1558 = vcmp.lt.s32.totalorder %v1550, 4
    %vm1559 = vcmp.lt.s32.totalorder %v1551, 4
    %vm1560 = vcmp.lt.s32.totalorder %v1552, 4
    %vm1561 = vcmp.lt.s32.totalorder %v1553, 4
    %vm1562 = vcmp.lt.s32.totalorder %v1554, 4
    %vm1563 = vcmp.lt.s32.totalorder %v1555, 4
    %vm1564 = vcmp.lt.s32.totalorder %v1556, 4
    %vm1565 = vcmp.lt.s32.totalorder %v1557, 4
    %v1566 = vsel %vm1558, %v1503, 0.0
    %v1567 = vsel %vm1559, %v1508, 0.0
    %v1568 = vsel %vm1560, %v1513, 0.0
    %v1569 = vsel %vm1561, %v1518, 0.0
    %v1570 = vsel %vm1562, %v1523, 0.0
    %v1571 = vsel %vm1563, %v1528, 0.0
    %v1572 = vsel %vm1564, %v1533, 0.0
    %v1573 = vsel %vm1565, %v1538, 0.0
    %v1574 = vmul.f32 %v1566, %v1566
    %v1575 = vmul.f32 %v1567, %v1567
    %v1576 = vmul.f32 %v1568, %v1568
    %v1577 = vmul.f32 %v1569, %v1569
    %v1578 = vmul.f32 %v1570, %v1570
    %v1579 = vmul.f32 %v1571, %v1571
    %v1580 = vmul.f32 %v1572, %v1572
    %v1581 = vmul.f32 %v1573, %v1573
    %v1582 = vsel %vm435, %v1574, 0.0
    %v1583 = vsel %vm435, %v1575, 0.0
    %v1584 = vadd.f32 %v1582, %v1583
    %v1585 = vsel %vm435, %v1576, 0.0
    %v1586 = vadd.f32 %v1584, %v1585
    %v1587 = vsel %vm435, %v1577, 0.0
    %v1588 = vadd.f32 %v1586, %v1587
    %v1589 = vsel %vm435, %v1578, 0.0
    %v1590 = vadd.f32 %v1588, %v1589
    %v1591 = vsel %vm435, %v1579, 0.0
    %v1592 = vadd.f32 %v1590, %v1591
    %v1593 = vsel %vm435, %v1580, 0.0
    %v1594 = vadd.f32 %v1592, %v1593
    %v1595 = vsel %vm435, %v1581, 0.0
    %v1596 = vadd.f32 %v1594, %v1595
    %1597 = vadd.xlane.f32.xlu0 %v1596
    %v1598 = vpop.xlane.xlu0 %1597
    %v1599 = vrot.slane %v1598, 4
    %v1600 = vadd.f32 %v1598, %v1599
    %v1601 = vrot.slane %v1600, 2
    %v1602 = vadd.f32 %v1600, %v1601
    %v1603 = vrot.slane %v1602, 1
    %v1604 = vadd.f32 %v1602, %v1603
    %s1605 = vtos %v1604
    %s1606 = smul.f32 %s1605, 0.001953125
    %s1607 = scalar_lea.smem [#allocation2], 0
    %1608 = sst [smem:[%s1607]] %s1606
    // Predicated region
    $region14: #{ddpm_forward.1} parent=1 // pred_check
      _
    $region15: #{ddpm_forward.1} parent=1 // pred_check_branch
      %1610 = sbr.rel (0) target = $region17
    $region16: #{ddpm_forward.1} parent=1 // pred_region
      %s1612 = ssub.s32 16, 16
      %1613 = vsyncadd [#allocation3], %s1612
      %1616 = dma.smem_to_hbm [#allocation2], 16, %s3, [#allocation3]
    $region17: #{ddpm_forward.1} parent=1 // pred_fallthru
      _
    // Predicated region
    $region18: #{ddpm_forward.1} parent=1 // pred_check
      _
    $region19: #{ddpm_forward.1} parent=1 // pred_check_branch
      %1618 = sbr.rel (0) target = $region21
    $region20: #{ddpm_forward.1} parent=1 // pred_region
      %1619 = dma.done [#allocation3], 16
    $region21: #{ddpm_forward.1} parent=1 // pred_fallthru
      _
    %1620 = sfence
    %1621 = vsyncpa [#allocation3], 1

</llo_original>
